<compile_context>
chip_gen: v5e
topology: v5e:2x2
jax: 0.10.0
libtpu: 0.0.40
codegen_flags: <defaults>
</compile_context>

<pallas_src>
import numpy as np

import jax
import jax.numpy as jnp
from jax import lax
from jax.experimental import pallas as pl
from jax.experimental.pallas import tpu as pltpu


# ---------------------------------------------------------------------------
# Trace-time construction of the separable linear operators (numpy, float64).
# ---------------------------------------------------------------------------
def _bilinear_resize_matrix(out_n, in_n):
    """Dense 1-D factor of F.interpolate(mode='bilinear', align_corners=False)."""
    R = np.zeros((out_n, in_n), dtype=np.float64)
    scale = in_n / out_n
    for i in range(out_n):
        src = max((i + 0.5) * scale - 0.5, 0.0)
        i0f = np.floor(src)
        lam = src - i0f
        i0 = min(int(i0f), in_n - 1)
        i1 = min(i0 + 1, in_n - 1)
        R[i, i0] += 1.0 - lam
        R[i, i1] += lam
    return R


def _gaussian_blur_matrix(n, kernel_size, sigma):
    """1-D factor of MullerResizer's zero-padded (separable) Gaussian blur."""
    radius = kernel_size // 2
    coords = np.arange(2 * radius + 1, dtype=np.float64) - radius
    g = np.exp(-(coords ** 2) / (2.0 * sigma ** 2))
    g = g / g.sum()          # outer(g, g) then sums to 1, matching the 2-D kernel
    B = np.zeros((n, n), dtype=np.float64)
    for i in range(n):
        for t, off in enumerate(range(-radius, radius + 1)):
            j = i + off
            if 0 <= j < n:
                B[i, j] += g[t]
    return B


# ---------------------------------------------------------------------------
# Pallas kernel: one batch element per grid step.
# ---------------------------------------------------------------------------
def _make_muller_kernel(num_layers, C):
    n_branch = num_layers + 1

    def kernel(wb_ref, x_ref, *refs):
        mat_refs = refs[: 2 * n_branch]        # (hM_0, wT_0, hM_1, wT_1, ...)
        o_ref = refs[2 * n_branch]

        X = x_ref[0]                           # (C, Hi, Wi)
        Cc, Hi, Wi = X.shape
        X2 = X.reshape(Cc * Hi, Wi)            # lane dim preserved, cheap view

        # W-direction resize/blur for every branch, batched over channels
        # (rows = C*Hi, lanes = Wo).
        ys = []
        for b in range(n_branch):
            wT = mat_refs[2 * b + 1][...]      # (Wi, Wo)
            y = jnp.dot(X2, wT, preferred_element_type=jnp.float32)
            ys.append(y.reshape(Cc, Hi, wT.shape[1]))

        # H-direction matmul + per-layer residual / tanh combine, per channel.
        for c in range(C):
            br = [jnp.dot(mat_refs[2 * b][...], ys[b][c],
                          preferred_element_type=jnp.float32)
                  for b in range(n_branch)]    # each (Ho, Wo)
            net = br[0]                        # base resized image
            prev = br[0]
            for k in range(num_layers):
                w = wb_ref[2 * k]
                bia = wb_ref[2 * k + 1]
                # resize(blur^{k+1} x) - resize(blur^k x) == resize(residual_k)
                scaled = w * (br[k + 1] - prev) + bia
                net = net + jnp.tanh(jnp.clip(scaled, -3.0, 3.0))
                prev = br[k + 1]
            o_ref[0, c] = net.astype(o_ref.dtype)

    return kernel


def muller_resizer_forward(x, target_size, weights, biases, *,
                           kernel_size=5, stddev=1.0):
    """x: (N, C, Hi, Wi) float32 NCHW.  Returns (N, C, Ho, Wo)."""
    N, C, Hi, Wi = x.shape
    Ho, Wo = target_size
    L = len(weights)
    sigma = max(float(stddev), 0.1)

    Rh = _bilinear_resize_matrix(Ho, Hi)
    Rw = _bilinear_resize_matrix(Wo, Wi)
    Bh = _gaussian_blur_matrix(Hi, kernel_size, sigma)
    Bw = _gaussian_blur_matrix(Wi, kernel_size, sigma)

    # Composite branch matrices: branch k applies resize o blur^k.
    mat_args = []
    Ph, Pw = np.eye(Hi), np.eye(Wi)
    for _ in range(L + 1):
        Ah = Rh @ Ph                                        # (Ho, Hi)
        Aw = Rw @ Pw                                        # (Wo, Wi)
        mat_args.append(jnp.asarray(Ah, jnp.float32))       # H-matrix
        mat_args.append(jnp.asarray(Aw.T, jnp.float32))     # W-matrix, transposed
        Ph = Ph @ Bh
        Pw = Pw @ Bw

    # Per-layer scalars (w_0, b_0, w_1, b_1, ...) -> SMEM.
    wb = jnp.stack([jnp.asarray(v, jnp.float32).reshape(())
                    for pair in zip(weights, biases) for v in pair])

    in_specs = [pl.BlockSpec(memory_space=pltpu.MemorySpace.SMEM)]          # wb
    in_specs.append(pl.BlockSpec((1, C, Hi, Wi), lambda n: (n, 0, 0, 0)))   # x
    for m in mat_args:
        in_specs.append(pl.BlockSpec(m.shape, lambda n: (0, 0)))            # mats

    kernel = _make_muller_kernel(L, C)

    return pl.pallas_call(
        kernel,
        out_shape=jax.ShapeDtypeStruct((N, C, Ho, Wo), x.dtype),
        grid_spec=pltpu.PrefetchScalarGridSpec(
            num_scalar_prefetch=0,
            grid=(N,),
            in_specs=in_specs,
            out_specs=pl.BlockSpec((1, C, Ho, Wo), lambda n: (n, 0, 0, 0)),
        ),
        compiler_params=pltpu.CompilerParams(
            dimension_semantics=("parallel",)),
    )(wb, x, *mat_args)


# ---------------------------------------------------------------------------
# Plain-JAX reference mirroring the PyTorch module (independent code path:
# gather-based bilinear + depthwise conv blur).
# ---------------------------------------------------------------------------
def _bilinear_resize_ref(x, size):
    N, C, Hi, Wi = x.shape
    Ho, Wo = size

    def idx_lam(out_n, in_n):
        i = jnp.arange(out_n, dtype=jnp.float32)
        src = jnp.maximum((i + 0.5) * (in_n / out_n) - 0.5, 0.0)
        i0f = jnp.floor(src)
        lam = src - i0f
        i0 = jnp.minimum(i0f.astype(jnp.int32), in_n - 1)
        i1 = jnp.minimum(i0 + 1, in_n - 1)
        return i0, i1, lam

    h0, h1, lh = idx_lam(Ho, Hi)
    w0, w1, lw = idx_lam(Wo, Wi)
    xh = (x[:, :, h0, :] * (1.0 - lh)[None, None, :, None]
          + x[:, :, h1, :] * lh[None, None, :, None])
    out = (xh[:, :, :, w0] * (1.0 - lw)[None, None, None, :]
           + xh[:, :, :, w1] * lw[None, None, None, :])
    return out


def ref_forward(x, target_size, weights, biases, *, kernel_size=5, stddev=1.0):
    N, C, Hi, Wi = x.shape
    sigma = max(float(stddev), 0.1)
    radius = kernel_size // 2
    coords = jnp.arange(2 * radius + 1, dtype=x.dtype) - radius
    k2 = jnp.exp(-(coords[:, None] ** 2 + coords[None, :] ** 2)
                 / (2.0 * sigma ** 2))
    k2 = k2 / jnp.sum(k2)
    k2 = jnp.broadcast_to(k2[None, None],
                          (C, 1, 2 * radius + 1, 2 * radius + 1))

    net = _bilinear_resize_ref(x, target_size)
    inputs = x
    for w, b in zip(weights, biases):
        blurred = lax.conv_general_dilated(
            inputs, k2, (1, 1), ((radius, radius), (radius, radius)),
            dimension_numbers=('NCHW', 'OIHW', 'NCHW'),
            feature_group_count=C)
        residual = blurred - inputs
        rr = _bilinear_resize_ref(residual, target_size)
        net = net + jnp.tanh(jnp.clip(w * rr + b, -3.0, 3.0))
        inputs = blurred
    return net


if __name__ == "__main__":
    N, C, Hi, Wi = 2, 4, 16, 16
    target_size = (32, 32)
    num_layers = 2

    key = jax.random.PRNGKey(0)
    kx, kp = jax.random.split(key)
    x = jax.random.normal(kx, (N, C, Hi, Wi), jnp.float32)

    # Non-trivial learned scalars (module's `init_weights` path), deterministic.
    init = jax.random.normal(kp, (2 * num_layers,), jnp.float32) * 0.5
    weights = [init[2 * i] for i in range(num_layers)]
    biases = [init[2 * i + 1] for i in range(num_layers)]

    out = muller_resizer_forward(x, target_size, weights, biases)
    out = jax.block_until_ready(out)

    ref = jax.block_until_ready(ref_forward(x, target_size, weights, biases))

    assert out.shape == (N, C) + target_size
    err = float(jnp.max(jnp.abs(out - ref)))
    assert jnp.allclose(out, ref, atol=1e-4, rtol=1e-4), f"max abs err {err}"

    print("KERNEL_OK")
</pallas_src>

<mosaic_0001>
module attributes {stable_mosaic.version = 11 : i64} {
  func.func @kernel(%arg0: i32, %arg1: memref<4xf32, #tpu.memory_space<smem>>, %arg2: memref<1x4x16x16xf32, #tpu.memory_space<vmem>>, %arg3: memref<32x16xf32, #tpu.memory_space<vmem>>, %arg4: memref<16x32xf32, #tpu.memory_space<vmem>>, %arg5: memref<32x16xf32, #tpu.memory_space<vmem>>, %arg6: memref<16x32xf32, #tpu.memory_space<vmem>>, %arg7: memref<32x16xf32, #tpu.memory_space<vmem>>, %arg8: memref<16x32xf32, #tpu.memory_space<vmem>>, %arg9: memref<1x4x32x32xf32, #tpu.memory_space<vmem>>) attributes {dimension_semantics = [#tpu.dimension_semantics<parallel>], iteration_bounds = array<i64: 2>, scalar_prefetch = 0 : i64, scratch_operands = 0 : i64, tpu.core_type = #tpu.core_type<tc>, window_params = [{transform_indices = @transform_0, window_bounds = array<i64: 4>}, {transform_indices = @transform_1, window_bounds = array<i64: 1, 4, 16, 16>}, {pipeline_mode = #tpu.pipeline_mode<synchronous>, transform_indices = @transform_2, window_bounds = array<i64: 32, 16>}, {pipeline_mode = #tpu.pipeline_mode<synchronous>, transform_indices = @transform_3, window_bounds = array<i64: 16, 32>}, {pipeline_mode = #tpu.pipeline_mode<synchronous>, transform_indices = @transform_4, window_bounds = array<i64: 32, 16>}, {pipeline_mode = #tpu.pipeline_mode<synchronous>, transform_indices = @transform_5, window_bounds = array<i64: 16, 32>}, {pipeline_mode = #tpu.pipeline_mode<synchronous>, transform_indices = @transform_6, window_bounds = array<i64: 32, 16>}, {pipeline_mode = #tpu.pipeline_mode<synchronous>, transform_indices = @transform_7, window_bounds = array<i64: 16, 32>}, {transform_indices = @transform_8, window_bounds = array<i64: 1, 4, 32, 32>}]} {
    %c0 = arith.constant 0 : index
    %c0_0 = arith.constant 0 : index
    %c0_1 = arith.constant 0 : index
    %c0_2 = arith.constant 0 : index
    %0 = vector.load %arg2[%c0, %c0_0, %c0_1, %c0_2] : memref<1x4x16x16xf32, #tpu.memory_space<vmem>>, vector<1x4x16x16xf32>
    %1 = vector.shape_cast %0 : vector<1x4x16x16xf32> to vector<4x16x16xf32>
    %2 = vector.shape_cast %1 : vector<4x16x16xf32> to vector<64x16xf32>
    %c0_3 = arith.constant 0 : index
    %c0_4 = arith.constant 0 : index
    %3 = vector.load %arg4[%c0_3, %c0_4] : memref<16x32xf32, #tpu.memory_space<vmem>>, vector<16x32xf32>
    %cst = arith.constant dense<0.000000e+00> : vector<64x32xf32>
    %4 = tpu.matmul %2, %3, %cst {dimension_numbers = #tpu.dot_dimension_numbers<[1], [0], [0], [1], [0, 0, 1, 1], [], []>} : vector<64x16xf32>, vector<16x32xf32>, vector<64x32xf32> -> vector<64x32xf32>
    %5 = vector.shape_cast %4 : vector<64x32xf32> to vector<4x16x32xf32>
    %c0_5 = arith.constant 0 : index
    %c0_6 = arith.constant 0 : index
    %6 = vector.load %arg6[%c0_5, %c0_6] : memref<16x32xf32, #tpu.memory_space<vmem>>, vector<16x32xf32>
    %cst_7 = arith.constant dense<0.000000e+00> : vector<64x32xf32>
    %7 = tpu.matmul %2, %6, %cst_7 {dimension_numbers = #tpu.dot_dimension_numbers<[1], [0], [0], [1], [0, 0, 1, 1], [], []>} : vector<64x16xf32>, vector<16x32xf32>, vector<64x32xf32> -> vector<64x32xf32>
    %8 = vector.shape_cast %7 : vector<64x32xf32> to vector<4x16x32xf32>
    %c0_8 = arith.constant 0 : index
    %c0_9 = arith.constant 0 : index
    %9 = vector.load %arg8[%c0_8, %c0_9] : memref<16x32xf32, #tpu.memory_space<vmem>>, vector<16x32xf32>
    %cst_10 = arith.constant dense<0.000000e+00> : vector<64x32xf32>
    %10 = tpu.matmul %2, %9, %cst_10 {dimension_numbers = #tpu.dot_dimension_numbers<[1], [0], [0], [1], [0, 0, 1, 1], [], []>} : vector<64x16xf32>, vector<16x32xf32>, vector<64x32xf32> -> vector<64x32xf32>
    %11 = vector.shape_cast %10 : vector<64x32xf32> to vector<4x16x32xf32>
    %c0_11 = arith.constant 0 : index
    %c0_12 = arith.constant 0 : index
    %12 = vector.load %arg3[%c0_11, %c0_12] : memref<32x16xf32, #tpu.memory_space<vmem>>, vector<32x16xf32>
    %13 = vector.extract_strided_slice %5 {offsets = [0, 0, 0], sizes = [1, 16, 32], strides = [1, 1, 1]} : vector<4x16x32xf32> to vector<1x16x32xf32>
    %14 = vector.shape_cast %13 : vector<1x16x32xf32> to vector<16x32xf32>
    %cst_13 = arith.constant dense<0.000000e+00> : vector<32x32xf32>
    %15 = tpu.matmul %12, %14, %cst_13 {dimension_numbers = #tpu.dot_dimension_numbers<[1], [0], [0], [1], [0, 0, 1, 1], [], []>} : vector<32x16xf32>, vector<16x32xf32>, vector<32x32xf32> -> vector<32x32xf32>
    %c0_14 = arith.constant 0 : index
    %c0_15 = arith.constant 0 : index
    %16 = vector.load %arg5[%c0_14, %c0_15] : memref<32x16xf32, #tpu.memory_space<vmem>>, vector<32x16xf32>
    %17 = vector.extract_strided_slice %8 {offsets = [0, 0, 0], sizes = [1, 16, 32], strides = [1, 1, 1]} : vector<4x16x32xf32> to vector<1x16x32xf32>
    %18 = vector.shape_cast %17 : vector<1x16x32xf32> to vector<16x32xf32>
    %cst_16 = arith.constant dense<0.000000e+00> : vector<32x32xf32>
    %19 = tpu.matmul %16, %18, %cst_16 {dimension_numbers = #tpu.dot_dimension_numbers<[1], [0], [0], [1], [0, 0, 1, 1], [], []>} : vector<32x16xf32>, vector<16x32xf32>, vector<32x32xf32> -> vector<32x32xf32>
    %c0_17 = arith.constant 0 : index
    %c0_18 = arith.constant 0 : index
    %20 = vector.load %arg7[%c0_17, %c0_18] : memref<32x16xf32, #tpu.memory_space<vmem>>, vector<32x16xf32>
    %21 = vector.extract_strided_slice %11 {offsets = [0, 0, 0], sizes = [1, 16, 32], strides = [1, 1, 1]} : vector<4x16x32xf32> to vector<1x16x32xf32>
    %22 = vector.shape_cast %21 : vector<1x16x32xf32> to vector<16x32xf32>
    %cst_19 = arith.constant dense<0.000000e+00> : vector<32x32xf32>
    %23 = tpu.matmul %20, %22, %cst_19 {dimension_numbers = #tpu.dot_dimension_numbers<[1], [0], [0], [1], [0, 0, 1, 1], [], []>} : vector<32x16xf32>, vector<16x32xf32>, vector<32x32xf32> -> vector<32x32xf32>
    %c0_20 = arith.constant 0 : index
    %24 = memref.load %arg1[%c0_20] : memref<4xf32, #tpu.memory_space<smem>>
    %c1 = arith.constant 1 : index
    %25 = memref.load %arg1[%c1] : memref<4xf32, #tpu.memory_space<smem>>
    %26 = arith.subf %19, %15 : vector<32x32xf32>
    %27 = vector.broadcast %24 : f32 to vector<32x32xf32>
    %28 = arith.mulf %27, %26 : vector<32x32xf32>
    %29 = vector.broadcast %25 : f32 to vector<32x32xf32>
    %30 = arith.addf %28, %29 : vector<32x32xf32>
    %cst_21 = arith.constant -3.000000e+00 : f32
    %cst_22 = arith.constant 3.000000e+00 : f32
    %31 = vector.broadcast %cst_21 : f32 to vector<32x32xf32>
    %32 = arith.maximumf %31, %30 : vector<32x32xf32>
    %33 = vector.broadcast %cst_22 : f32 to vector<32x32xf32>
    %34 = arith.minimumf %33, %32 : vector<32x32xf32>
    %35 = math.tanh %34 : vector<32x32xf32>
    %36 = arith.addf %15, %35 : vector<32x32xf32>
    %c2 = arith.constant 2 : index
    %37 = memref.load %arg1[%c2] : memref<4xf32, #tpu.memory_space<smem>>
    %c3 = arith.constant 3 : index
    %38 = memref.load %arg1[%c3] : memref<4xf32, #tpu.memory_space<smem>>
    %39 = arith.subf %23, %19 : vector<32x32xf32>
    %40 = vector.broadcast %37 : f32 to vector<32x32xf32>
    %41 = arith.mulf %40, %39 : vector<32x32xf32>
    %42 = vector.broadcast %38 : f32 to vector<32x32xf32>
    %43 = arith.addf %41, %42 : vector<32x32xf32>
    %cst_23 = arith.constant -3.000000e+00 : f32
    %cst_24 = arith.constant 3.000000e+00 : f32
    %44 = vector.broadcast %cst_23 : f32 to vector<32x32xf32>
    %45 = arith.maximumf %44, %43 : vector<32x32xf32>
    %46 = vector.broadcast %cst_24 : f32 to vector<32x32xf32>
    %47 = arith.minimumf %46, %45 : vector<32x32xf32>
    %48 = math.tanh %47 : vector<32x32xf32>
    %49 = arith.addf %36, %48 : vector<32x32xf32>
    %c0_25 = arith.constant 0 : index
    %c0_26 = arith.constant 0 : index
    %c0_27 = arith.constant 0 : index
    %c0_28 = arith.constant 0 : index
    %50 = vector.load %arg9[%c0_25, %c0_26, %c0_27, %c0_28] : memref<1x4x32x32xf32, #tpu.memory_space<vmem>>, vector<1x1x32x32xf32>
    %51 = vector.shape_cast %50 : vector<1x1x32x32xf32> to vector<32x32xf32>
    %52 = vector.shape_cast %49 : vector<32x32xf32> to vector<1x1x32x32xf32>
    tpu.vector_store %arg9[%c0_25, %c0_26, %c0_27, %c0_28], %52 {strides = array<i32>} : memref<1x4x32x32xf32, #tpu.memory_space<vmem>>, vector<1x1x32x32xf32>,
    %c0_29 = arith.constant 0 : index
    %c0_30 = arith.constant 0 : index
    %53 = vector.load %arg3[%c0_29, %c0_30] : memref<32x16xf32, #tpu.memory_space<vmem>>, vector<32x16xf32>
    %54 = vector.extract_strided_slice %5 {offsets = [1, 0, 0], sizes = [1, 16, 32], strides = [1, 1, 1]} : vector<4x16x32xf32> to vector<1x16x32xf32>
    %55 = vector.shape_cast %54 : vector<1x16x32xf32> to vector<16x32xf32>
    %cst_31 = arith.constant dense<0.000000e+00> : vector<32x32xf32>
    %56 = tpu.matmul %53, %55, %cst_31 {dimension_numbers = #tpu.dot_dimension_numbers<[1], [0], [0], [1], [0, 0, 1, 1], [], []>} : vector<32x16xf32>, vector<16x32xf32>, vector<32x32xf32> -> vector<32x32xf32>
    %c0_32 = arith.constant 0 : index
    %c0_33 = arith.constant 0 : index
    %57 = vector.load %arg5[%c0_32, %c0_33] : memref<32x16xf32, #tpu.memory_space<vmem>>, vector<32x16xf32>
    %58 = vector.extract_strided_slice %8 {offsets = [1, 0, 0], sizes = [1, 16, 32], strides = [1, 1, 1]} : vector<4x16x32xf32> to vector<1x16x32xf32>
    %59 = vector.shape_cast %58 : vector<1x16x32xf32> to vector<16x32xf32>
    %cst_34 = arith.constant dense<0.000000e+00> : vector<32x32xf32>
    %60 = tpu.matmul %57, %59, %cst_34 {dimension_numbers = #tpu.dot_dimension_numbers<[1], [0], [0], [1], [0, 0, 1, 1], [], []>} : vector<32x16xf32>, vector<16x32xf32>, vector<32x32xf32> -> vector<32x32xf32>
    %c0_35 = arith.constant 0 : index
    %c0_36 = arith.constant 0 : index
    %61 = vector.load %arg7[%c0_35, %c0_36] : memref<32x16xf32, #tpu.memory_space<vmem>>, vector<32x16xf32>
    %62 = vector.extract_strided_slice %11 {offsets = [1, 0, 0], sizes = [1, 16, 32], strides = [1, 1, 1]} : vector<4x16x32xf32> to vector<1x16x32xf32>
    %63 = vector.shape_cast %62 : vector<1x16x32xf32> to vector<16x32xf32>
    %cst_37 = arith.constant dense<0.000000e+00> : vector<32x32xf32>
    %64 = tpu.matmul %61, %63, %cst_37 {dimension_numbers = #tpu.dot_dimension_numbers<[1], [0], [0], [1], [0, 0, 1, 1], [], []>} : vector<32x16xf32>, vector<16x32xf32>, vector<32x32xf32> -> vector<32x32xf32>
    %c0_38 = arith.constant 0 : index
    %65 = memref.load %arg1[%c0_38] : memref<4xf32, #tpu.memory_space<smem>>
    %c1_39 = arith.constant 1 : index
    %66 = memref.load %arg1[%c1_39] : memref<4xf32, #tpu.memory_space<smem>>
    %67 = arith.subf %60, %56 : vector<32x32xf32>
    %68 = vector.broadcast %65 : f32 to vector<32x32xf32>
    %69 = arith.mulf %68, %67 : vector<32x32xf32>
    %70 = vector.broadcast %66 : f32 to vector<32x32xf32>
    %71 = arith.addf %69, %70 : vector<32x32xf32>
    %cst_40 = arith.constant -3.000000e+00 : f32
    %cst_41 = arith.constant 3.000000e+00 : f32
    %72 = vector.broadcast %cst_40 : f32 to vector<32x32xf32>
    %73 = arith.maximumf %72, %71 : vector<32x32xf32>
    %74 = vector.broadcast %cst_41 : f32 to vector<32x32xf32>
    %75 = arith.minimumf %74, %73 : vector<32x32xf32>
    %76 = math.tanh %75 : vector<32x32xf32>
    %77 = arith.addf %56, %76 : vector<32x32xf32>
    %c2_42 = arith.constant 2 : index
    %78 = memref.load %arg1[%c2_42] : memref<4xf32, #tpu.memory_space<smem>>
    %c3_43 = arith.constant 3 : index
    %79 = memref.load %arg1[%c3_43] : memref<4xf32, #tpu.memory_space<smem>>
    %80 = arith.subf %64, %60 : vector<32x32xf32>
    %81 = vector.broadcast %78 : f32 to vector<32x32xf32>
    %82 = arith.mulf %81, %80 : vector<32x32xf32>
    %83 = vector.broadcast %79 : f32 to vector<32x32xf32>
    %84 = arith.addf %82, %83 : vector<32x32xf32>
    %cst_44 = arith.constant -3.000000e+00 : f32
    %cst_45 = arith.constant 3.000000e+00 : f32
    %85 = vector.broadcast %cst_44 : f32 to vector<32x32xf32>
    %86 = arith.maximumf %85, %84 : vector<32x32xf32>
    %87 = vector.broadcast %cst_45 : f32 to vector<32x32xf32>
    %88 = arith.minimumf %87, %86 : vector<32x32xf32>
    %89 = math.tanh %88 : vector<32x32xf32>
    %90 = arith.addf %77, %89 : vector<32x32xf32>
    %c0_46 = arith.constant 0 : index
    %c1_47 = arith.constant 1 : index
    %c0_48 = arith.constant 0 : index
    %c0_49 = arith.constant 0 : index
    %91 = vector.load %arg9[%c0_46, %c1_47, %c0_48, %c0_49] : memref<1x4x32x32xf32, #tpu.memory_space<vmem>>, vector<1x1x32x32xf32>
    %92 = vector.shape_cast %91 : vector<1x1x32x32xf32> to vector<32x32xf32>
    %93 = vector.shape_cast %90 : vector<32x32xf32> to vector<1x1x32x32xf32>
    tpu.vector_store %arg9[%c0_46, %c1_47, %c0_48, %c0_49], %93 {strides = array<i32>} : memref<1x4x32x32xf32, #tpu.memory_space<vmem>>, vector<1x1x32x32xf32>,
    %c0_50 = arith.constant 0 : index
    %c0_51 = arith.constant 0 : index
    %94 = vector.load %arg3[%c0_50, %c0_51] : memref<32x16xf32, #tpu.memory_space<vmem>>, vector<32x16xf32>
    %95 = vector.extract_strided_slice %5 {offsets = [2, 0, 0], sizes = [1, 16, 32], strides = [1, 1, 1]} : vector<4x16x32xf32> to vector<1x16x32xf32>
    %96 = vector.shape_cast %95 : vector<1x16x32xf32> to vector<16x32xf32>
    %cst_52 = arith.constant dense<0.000000e+00> : vector<32x32xf32>
    %97 = tpu.matmul %94, %96, %cst_52 {dimension_numbers = #tpu.dot_dimension_numbers<[1], [0], [0], [1], [0, 0, 1, 1], [], []>} : vector<32x16xf32>, vector<16x32xf32>, vector<32x32xf32> -> vector<32x32xf32>
    %c0_53 = arith.constant 0 : index
    %c0_54 = arith.constant 0 : index
    %98 = vector.load %arg5[%c0_53, %c0_54] : memref<32x16xf32, #tpu.memory_space<vmem>>, vector<32x16xf32>
    %99 = vector.extract_strided_slice %8 {offsets = [2, 0, 0], sizes = [1, 16, 32], strides = [1, 1, 1]} : vector<4x16x32xf32> to vector<1x16x32xf32>
    %100 = vector.shape_cast %99 : vector<1x16x32xf32> to vector<16x32xf32>
    %cst_55 = arith.constant dense<0.000000e+00> : vector<32x32xf32>
    %101 = tpu.matmul %98, %100, %cst_55 {dimension_numbers = #tpu.dot_dimension_numbers<[1], [0], [0], [1], [0, 0, 1, 1], [], []>} : vector<32x16xf32>, vector<16x32xf32>, vector<32x32xf32> -> vector<32x32xf32>
    %c0_56 = arith.constant 0 : index
    %c0_57 = arith.constant 0 : index
    %102 = vector.load %arg7[%c0_56, %c0_57] : memref<32x16xf32, #tpu.memory_space<vmem>>, vector<32x16xf32>
    %103 = vector.extract_strided_slice %11 {offsets = [2, 0, 0], sizes = [1, 16, 32], strides = [1, 1, 1]} : vector<4x16x32xf32> to vector<1x16x32xf32>
    %104 = vector.shape_cast %103 : vector<1x16x32xf32> to vector<16x32xf32>
    %cst_58 = arith.constant dense<0.000000e+00> : vector<32x32xf32>
    %105 = tpu.matmul %102, %104, %cst_58 {dimension_numbers = #tpu.dot_dimension_numbers<[1], [0], [0], [1], [0, 0, 1, 1], [], []>} : vector<32x16xf32>, vector<16x32xf32>, vector<32x32xf32> -> vector<32x32xf32>
    %c0_59 = arith.constant 0 : index
    %106 = memref.load %arg1[%c0_59] : memref<4xf32, #tpu.memory_space<smem>>
    %c1_60 = arith.constant 1 : index
    %107 = memref.load %arg1[%c1_60] : memref<4xf32, #tpu.memory_space<smem>>
    %108 = arith.subf %101, %97 : vector<32x32xf32>
    %109 = vector.broadcast %106 : f32 to vector<32x32xf32>
    %110 = arith.mulf %109, %108 : vector<32x32xf32>
    %111 = vector.broadcast %107 : f32 to vector<32x32xf32>
    %112 = arith.addf %110, %111 : vector<32x32xf32>
    %cst_61 = arith.constant -3.000000e+00 : f32
    %cst_62 = arith.constant 3.000000e+00 : f32
    %113 = vector.broadcast %cst_61 : f32 to vector<32x32xf32>
    %114 = arith.maximumf %113, %112 : vector<32x32xf32>
    %115 = vector.broadcast %cst_62 : f32 to vector<32x32xf32>
    %116 = arith.minimumf %115, %114 : vector<32x32xf32>
    %117 = math.tanh %116 : vector<32x32xf32>
    %118 = arith.addf %97, %117 : vector<32x32xf32>
    %c2_63 = arith.constant 2 : index
    %119 = memref.load %arg1[%c2_63] : memref<4xf32, #tpu.memory_space<smem>>
    %c3_64 = arith.constant 3 : index
    %120 = memref.load %arg1[%c3_64] : memref<4xf32, #tpu.memory_space<smem>>
    %121 = arith.subf %105, %101 : vector<32x32xf32>
    %122 = vector.broadcast %119 : f32 to vector<32x32xf32>
    %123 = arith.mulf %122, %121 : vector<32x32xf32>
    %124 = vector.broadcast %120 : f32 to vector<32x32xf32>
    %125 = arith.addf %123, %124 : vector<32x32xf32>
    %cst_65 = arith.constant -3.000000e+00 : f32
    %cst_66 = arith.constant 3.000000e+00 : f32
    %126 = vector.broadcast %cst_65 : f32 to vector<32x32xf32>
    %127 = arith.maximumf %126, %125 : vector<32x32xf32>
    %128 = vector.broadcast %cst_66 : f32 to vector<32x32xf32>
    %129 = arith.minimumf %128, %127 : vector<32x32xf32>
    %130 = math.tanh %129 : vector<32x32xf32>
    %131 = arith.addf %118, %130 : vector<32x32xf32>
    %c0_67 = arith.constant 0 : index
    %c2_68 = arith.constant 2 : index
    %c0_69 = arith.constant 0 : index
    %c0_70 = arith.constant 0 : index
    %132 = vector.load %arg9[%c0_67, %c2_68, %c0_69, %c0_70] : memref<1x4x32x32xf32, #tpu.memory_space<vmem>>, vector<1x1x32x32xf32>
    %133 = vector.shape_cast %132 : vector<1x1x32x32xf32> to vector<32x32xf32>
    %134 = vector.shape_cast %131 : vector<32x32xf32> to vector<1x1x32x32xf32>
    tpu.vector_store %arg9[%c0_67, %c2_68, %c0_69, %c0_70], %134 {strides = array<i32>} : memref<1x4x32x32xf32, #tpu.memory_space<vmem>>, vector<1x1x32x32xf32>,
    %c0_71 = arith.constant 0 : index
    %c0_72 = arith.constant 0 : index
    %135 = vector.load %arg3[%c0_71, %c0_72] : memref<32x16xf32, #tpu.memory_space<vmem>>, vector<32x16xf32>
    %136 = vector.extract_strided_slice %5 {offsets = [3, 0, 0], sizes = [1, 16, 32], strides = [1, 1, 1]} : vector<4x16x32xf32> to vector<1x16x32xf32>
    %137 = vector.shape_cast %136 : vector<1x16x32xf32> to vector<16x32xf32>
    %cst_73 = arith.constant dense<0.000000e+00> : vector<32x32xf32>
    %138 = tpu.matmul %135, %137, %cst_73 {dimension_numbers = #tpu.dot_dimension_numbers<[1], [0], [0], [1], [0, 0, 1, 1], [], []>} : vector<32x16xf32>, vector<16x32xf32>, vector<32x32xf32> -> vector<32x32xf32>
    %c0_74 = arith.constant 0 : index
    %c0_75 = arith.constant 0 : index
    %139 = vector.load %arg5[%c0_74, %c0_75] : memref<32x16xf32, #tpu.memory_space<vmem>>, vector<32x16xf32>
    %140 = vector.extract_strided_slice %8 {offsets = [3, 0, 0], sizes = [1, 16, 32], strides = [1, 1, 1]} : vector<4x16x32xf32> to vector<1x16x32xf32>
    %141 = vector.shape_cast %140 : vector<1x16x32xf32> to vector<16x32xf32>
    %cst_76 = arith.constant dense<0.000000e+00> : vector<32x32xf32>
    %142 = tpu.matmul %139, %141, %cst_76 {dimension_numbers = #tpu.dot_dimension_numbers<[1], [0], [0], [1], [0, 0, 1, 1], [], []>} : vector<32x16xf32>, vector<16x32xf32>, vector<32x32xf32> -> vector<32x32xf32>
    %c0_77 = arith.constant 0 : index
    %c0_78 = arith.constant 0 : index
    %143 = vector.load %arg7[%c0_77, %c0_78] : memref<32x16xf32, #tpu.memory_space<vmem>>, vector<32x16xf32>
    %144 = vector.extract_strided_slice %11 {offsets = [3, 0, 0], sizes = [1, 16, 32], strides = [1, 1, 1]} : vector<4x16x32xf32> to vector<1x16x32xf32>
    %145 = vector.shape_cast %144 : vector<1x16x32xf32> to vector<16x32xf32>
    %cst_79 = arith.constant dense<0.000000e+00> : vector<32x32xf32>
    %146 = tpu.matmul %143, %145, %cst_79 {dimension_numbers = #tpu.dot_dimension_numbers<[1], [0], [0], [1], [0, 0, 1, 1], [], []>} : vector<32x16xf32>, vector<16x32xf32>, vector<32x32xf32> -> vector<32x32xf32>
    %c0_80 = arith.constant 0 : index
    %147 = memref.load %arg1[%c0_80] : memref<4xf32, #tpu.memory_space<smem>>
    %c1_81 = arith.constant 1 : index
    %148 = memref.load %arg1[%c1_81] : memref<4xf32, #tpu.memory_space<smem>>
    %149 = arith.subf %142, %138 : vector<32x32xf32>
    %150 = vector.broadcast %147 : f32 to vector<32x32xf32>
    %151 = arith.mulf %150, %149 : vector<32x32xf32>
    %152 = vector.broadcast %148 : f32 to vector<32x32xf32>
    %153 = arith.addf %151, %152 : vector<32x32xf32>
    %cst_82 = arith.constant -3.000000e+00 : f32
    %cst_83 = arith.constant 3.000000e+00 : f32
    %154 = vector.broadcast %cst_82 : f32 to vector<32x32xf32>
    %155 = arith.maximumf %154, %153 : vector<32x32xf32>
    %156 = vector.broadcast %cst_83 : f32 to vector<32x32xf32>
    %157 = arith.minimumf %156, %155 : vector<32x32xf32>
    %158 = math.tanh %157 : vector<32x32xf32>
    %159 = arith.addf %138, %158 : vector<32x32xf32>
    %c2_84 = arith.constant 2 : index
    %160 = memref.load %arg1[%c2_84] : memref<4xf32, #tpu.memory_space<smem>>
    %c3_85 = arith.constant 3 : index
    %161 = memref.load %arg1[%c3_85] : memref<4xf32, #tpu.memory_space<smem>>
    %162 = arith.subf %146, %142 : vector<32x32xf32>
    %163 = vector.broadcast %160 : f32 to vector<32x32xf32>
    %164 = arith.mulf %163, %162 : vector<32x32xf32>
    %165 = vector.broadcast %161 : f32 to vector<32x32xf32>
    %166 = arith.addf %164, %165 : vector<32x32xf32>
    %cst_86 = arith.constant -3.000000e+00 : f32
    %cst_87 = arith.constant 3.000000e+00 : f32
    %167 = vector.broadcast %cst_86 : f32 to vector<32x32xf32>
    %168 = arith.maximumf %167, %166 : vector<32x32xf32>
    %169 = vector.broadcast %cst_87 : f32 to vector<32x32xf32>
    %170 = arith.minimumf %169, %168 : vector<32x32xf32>
    %171 = math.tanh %170 : vector<32x32xf32>
    %172 = arith.addf %159, %171 : vector<32x32xf32>
    %c0_88 = arith.constant 0 : index
    %c3_89 = arith.constant 3 : index
    %c0_90 = arith.constant 0 : index
    %c0_91 = arith.constant 0 : index
    %173 = vector.load %arg9[%c0_88, %c3_89, %c0_90, %c0_91] : memref<1x4x32x32xf32, #tpu.memory_space<vmem>>, vector<1x1x32x32xf32>
    %174 = vector.shape_cast %173 : vector<1x1x32x32xf32> to vector<32x32xf32>
    %175 = vector.shape_cast %172 : vector<32x32xf32> to vector<1x1x32x32xf32>
    tpu.vector_store %arg9[%c0_88, %c3_89, %c0_90, %c0_91], %175 {strides = array<i32>} : memref<1x4x32x32xf32, #tpu.memory_space<vmem>>, vector<1x1x32x32xf32>,
    return
  }
  func.func @transform_0(%arg0: i32) -> i32 {
    %c0_i32 = arith.constant 0 : i32
    %c0_i32_0 = arith.constant 0 : i32
    return %c0_i32 : i32
  }
  func.func @transform_1(%arg0: i32) -> (i32, i32, i32, i32) {
    %c0_i32 = arith.constant 0 : i32
    %c0_i32_0 = arith.constant 0 : i32
    %c0_i32_1 = arith.constant 0 : i32
    %c0_i32_2 = arith.constant 0 : i32
    return %arg0, %c0_i32, %c0_i32_0, %c0_i32_1 : i32, i32, i32, i32
  }
  func.func @transform_2(%arg0: i32) -> (i32, i32) {
    %c0_i32 = arith.constant 0 : i32
    %c0_i32_0 = arith.constant 0 : i32
    %c0_i32_1 = arith.constant 0 : i32
    return %c0_i32, %c0_i32_0 : i32, i32
  }
  func.func @transform_3(%arg0: i32) -> (i32, i32) {
    %c0_i32 = arith.constant 0 : i32
    %c0_i32_0 = arith.constant 0 : i32
    %c0_i32_1 = arith.constant 0 : i32
    return %c0_i32, %c0_i32_0 : i32, i32
  }
  func.func @transform_4(%arg0: i32) -> (i32, i32) {
    %c0_i32 = arith.constant 0 : i32
    %c0_i32_0 = arith.constant 0 : i32
    %c0_i32_1 = arith.constant 0 : i32
    return %c0_i32, %c0_i32_0 : i32, i32
  }
  func.func @transform_5(%arg0: i32) -> (i32, i32) {
    %c0_i32 = arith.constant 0 : i32
    %c0_i32_0 = arith.constant 0 : i32
    %c0_i32_1 = arith.constant 0 : i32
    return %c0_i32, %c0_i32_0 : i32, i32
  }
  func.func @transform_6(%arg0: i32) -> (i32, i32) {
    %c0_i32 = arith.constant 0 : i32
    %c0_i32_0 = arith.constant 0 : i32
    %c0_i32_1 = arith.constant 0 : i32
    return %c0_i32, %c0_i32_0 : i32, i32
  }
  func.func @transform_7(%arg0: i32) -> (i32, i32) {
    %c0_i32 = arith.constant 0 : i32
    %c0_i32_0 = arith.constant 0 : i32
    %c0_i32_1 = arith.constant 0 : i32
    return %c0_i32, %c0_i32_0 : i32, i32
  }
  func.func @transform_8(%arg0: i32) -> (i32, i32, i32, i32) {
    %c0_i32 = arith.constant 0 : i32
    %c0_i32_0 = arith.constant 0 : i32
    %c0_i32_1 = arith.constant 0 : i32
    %c0_i32_2 = arith.constant 0 : i32
    return %arg0, %c0_i32, %c0_i32_0, %c0_i32_1 : i32, i32, i32, i32
  }
}

</mosaic_0001>

<llo_original>
// kernel: tpu_custom_call.1
$region0: #{tpu_custom_call.1}
  #allocation0 [shape = 'u32[]', space=smem, size = 0x4, offset = 0x4, fixed_abs, tag = 'smem constant byte address 0x4 - core index']
  #allocation1 [shape = 'u32[72,128]{1,0:T(1,128)}', space=vmem, size = 0x9000, scoped, tag = 'internal scratch']
  %s0 = inlined_call_operand.vmem [shape: f32[4], index: 0, kind: input, shape index: {}]
  %s1 = inlined_call_operand.hbm [shape: f32[2,4,16,16], index: 1, kind: input, shape index: {}]
  %s2 = inlined_call_operand.vmem [shape: f32[32,16], index: 2, kind: input, shape index: {}]
  %s3 = inlined_call_operand.vmem [shape: f32[16,32], index: 3, kind: input, shape index: {}]
  %s4 = inlined_call_operand.vmem [shape: f32[32,16], index: 4, kind: input, shape index: {}]
  %s5 = inlined_call_operand.vmem [shape: f32[16,32], index: 5, kind: input, shape index: {}]
  %s6 = inlined_call_operand.vmem [shape: f32[32,16], index: 6, kind: input, shape index: {}]
  %s7 = inlined_call_operand.vmem [shape: f32[16,32], index: 7, kind: input, shape index: {}]
  %s8 = inlined_call_operand.hbm [shape: f32[2,4,32,32], index: 8, kind: output, shape index: {}]
  %s9 = sld [smem:[#allocation0]]
  $region73: #{tpu_custom_call.1} parent=0
    _
  %s11 = ssub.s32 1, %s9
  %s12 = scalar_select 0, %s11, %s9
  $region1: #{tpu_custom_call.1} parent=0
    #allocation2 [shape = 'u8[512]{0}', space=smem, size = 0x200, scoped, tag = 'input window, operand 0, single buffered']
    #allocation3 [shape = 's32[2]{0}', space=sflag, size = 0x8, scoped, tag = 'scoped memory for tpu_custom_call.1']
    #allocation4 [shape = 's32[2]{0}', space=sflag, size = 0x8, scoped, tag = 'scoped memory for tpu_custom_call.1']
    #allocation5 [shape = 's32[2]{0}', space=sflag, size = 0x8, scoped, tag = 'scoped memory for tpu_custom_call.1']
    #allocation6 [shape = 'u8[65536]{0}', space=vmem, size = 0x10000, scoped, tag = 'input window, operand 1']
    #allocation7 [shape = 'u8[131072]{0}', space=vmem, size = 0x20000, scoped, tag = 'output window, operand 0']
    %13 = vsyncpa [#allocation5], 0
    %14 = vsyncpa [#allocation3], 0
    %s15 = scalar_lea.sflag [#allocation3], 1
    %16 = vsyncpa %s15, 0
    %17 = vsyncpa [#allocation4], 0
    %s18 = scalar_lea.sflag [#allocation4], 1
    %19 = vsyncpa %s18, 0
    loop: start=0, step=1, limit=4
    $region2: #{tpu_custom_call.1} parent=1 // loop_pre_header
      _
    $region3: #{tpu_custom_call.1} parent=1 // loop_header
      %s21 = sphi 0, %s25
      %p22 = scmp.ge.s32.totalorder %s21, 4
      %s29 = sphi 0, %s29
      %s31 = sphi 0, %s29
      %s32 = sphi 0, %s31
      %s46 = sphi 0, %s32
      %s52 = sphi 0, %s54
      %s55 = sphi 0, %s52
      %s56 = sphi 0, %s55
      %s72 = sphi 0, %s56
      %s76 = sphi 0, %s76
      %s78 = sphi 0, %s76
      %s79 = sphi 0, %s78
      %s93 = sphi 0, %s79
      %s97 = sphi 0, %s97
      %s99 = sphi 0, %s97
      %s100 = sphi 0, %s99
      %s114 = sphi 0, %s100
      %s118 = sphi 0, %s118
      %s120 = sphi 0, %s118
      %s121 = sphi 0, %s120
      %s135 = sphi 0, %s121
      %s139 = sphi 0, %s139
      %s141 = sphi 0, %s139
      %s142 = sphi 0, %s141
      %s156 = sphi 0, %s142
      %s160 = sphi 0, %s160
      %s162 = sphi 0, %s160
      %s163 = sphi 0, %s162
      %s177 = sphi 0, %s163
      %s181 = sphi 0, %s181
      %s183 = sphi 0, %s181
      %s184 = sphi 0, %s183
      %s198 = sphi 0, %s184
      %s204 = sphi 0, %s206
      %s207 = sphi 0, %s204
      %s208 = sphi 0, %s207
      %s224 = sphi 0, %s208
    $region4: #{tpu_custom_call.1} parent=1 // loop_header_branch
      %24 = sbr.rel (%p22) target = $region8
    $region5: #{tpu_custom_call.1} parent=1 // loop_body
      %s26 = ssub.s32 %s21, 1
      %s27 = ssub.s32 %s21, 2
      %s28 = sadd.s32 %s21, 1
      %s30 = sadd.s32 %s29, 1
      %p33 = scmp.eq.s32.totalorder %s21, 1
      %p34 = scmp.ne.s32.totalorder %s29, %s31
      %p35 = scmp.eq.s32.totalorder %s21, 0
      %p36 = por %p34, %p35
      %p37 = scmp.ne.s32.totalorder %s29, %s31
      %p38 = scmp.eq.s32.totalorder %s26, 1
      %p39 = por %p37, %p38
      %p40 = scmp.ne.s32.totalorder %s31, %s32
      %p41 = scmp.eq.s32.totalorder %s26, 0
      %p42 = por %p40, %p41
      %p43 = scmp.ne.s32.totalorder %s31, %s32
      %p44 = scmp.eq.s32.totalorder %s27, 1
      %p45 = por %p43, %p44
      %p47 = scmp.ne.s32.totalorder %s32, %s46
      %p48 = scmp.eq.s32.totalorder %s27, 0
      %p49 = por %p47, %p48
      %s50 = ssub.s32 %s21, %s28
      %p51 = scmp.eq.s32.totalorder %s50, 0
      %s53 = sadd.s32 %s52, 1
      %s54 = scalar_select %p51, %s52, %s53
      %p57 = pneg %p51
      %p58 = scmp.eq.s32.totalorder %s21, 1
      %p59 = por %p57, %p58
      %p60 = scmp.ne.s32.totalorder %s52, %s55
      %p61 = scmp.eq.s32.totalorder %s21, 0
      %p62 = por %p60, %p61
      %p63 = scmp.ne.s32.totalorder %s52, %s55
      %p64 = scmp.eq.s32.totalorder %s26, 1
      %p65 = por %p63, %p64
      %p66 = scmp.ne.s32.totalorder %s55, %s56
      %p67 = scmp.eq.s32.totalorder %s26, 0
      %p68 = por %p66, %p67
      %p69 = scmp.ne.s32.totalorder %s55, %s56
      %p70 = scmp.eq.s32.totalorder %s27, 1
      %p71 = por %p69, %p70
      %p73 = scmp.ne.s32.totalorder %s56, %s72
      %p74 = scmp.eq.s32.totalorder %s27, 0
      %p75 = por %p73, %p74
      %s77 = sadd.s32 %s76, 1
      %p80 = scmp.eq.s32.totalorder %s21, 1
      %p81 = scmp.ne.s32.totalorder %s76, %s78
      %p82 = scmp.eq.s32.totalorder %s21, 0
      %p83 = por %p81, %p82
      %p84 = scmp.ne.s32.totalorder %s76, %s78
      %p85 = scmp.eq.s32.totalorder %s26, 1
      %p86 = por %p84, %p85
      %p87 = scmp.ne.s32.totalorder %s78, %s79
      %p88 = scmp.eq.s32.totalorder %s26, 0
      %p89 = por %p87, %p88
      %p90 = scmp.ne.s32.totalorder %s78, %s79
      %p91 = scmp.eq.s32.totalorder %s27, 1
      %p92 = por %p90, %p91
      %p94 = scmp.ne.s32.totalorder %s79, %s93
      %p95 = scmp.eq.s32.totalorder %s27, 0
      %p96 = por %p94, %p95
      %s98 = sadd.s32 %s97, 1
      %p101 = scmp.eq.s32.totalorder %s21, 1
      %p102 = scmp.ne.s32.totalorder %s97, %s99
      %p103 = scmp.eq.s32.totalorder %s21, 0
      %p104 = por %p102, %p103
      %p105 = scmp.ne.s32.totalorder %s97, %s99
      %p106 = scmp.eq.s32.totalorder %s26, 1
      %p107 = por %p105, %p106
      %p108 = scmp.ne.s32.totalorder %s99, %s100
      %p109 = scmp.eq.s32.totalorder %s26, 0
      %p110 = por %p108, %p109
      %p111 = scmp.ne.s32.totalorder %s99, %s100
      %p112 = scmp.eq.s32.totalorder %s27, 1
      %p113 = por %p111, %p112
      %p115 = scmp.ne.s32.totalorder %s100, %s114
      %p116 = scmp.eq.s32.totalorder %s27, 0
      %p117 = por %p115, %p116
      %s119 = sadd.s32 %s118, 1
      %p122 = scmp.eq.s32.totalorder %s21, 1
      %p123 = scmp.ne.s32.totalorder %s118, %s120
      %p124 = scmp.eq.s32.totalorder %s21, 0
      %p125 = por %p123, %p124
      %p126 = scmp.ne.s32.totalorder %s118, %s120
      %p127 = scmp.eq.s32.totalorder %s26, 1
      %p128 = por %p126, %p127
      %p129 = scmp.ne.s32.totalorder %s120, %s121
      %p130 = scmp.eq.s32.totalorder %s26, 0
      %p131 = por %p129, %p130
      %p132 = scmp.ne.s32.totalorder %s120, %s121
      %p133 = scmp.eq.s32.totalorder %s27, 1
      %p134 = por %p132, %p133
      %p136 = scmp.ne.s32.totalorder %s121, %s135
      %p137 = scmp.eq.s32.totalorder %s27, 0
      %p138 = por %p136, %p137
      %s140 = sadd.s32 %s139, 1
      %p143 = scmp.eq.s32.totalorder %s21, 1
      %p144 = scmp.ne.s32.totalorder %s139, %s141
      %p145 = scmp.eq.s32.totalorder %s21, 0
      %p146 = por %p144, %p145
      %p147 = scmp.ne.s32.totalorder %s139, %s141
      %p148 = scmp.eq.s32.totalorder %s26, 1
      %p149 = por %p147, %p148
      %p150 = scmp.ne.s32.totalorder %s141, %s142
      %p151 = scmp.eq.s32.totalorder %s26, 0
      %p152 = por %p150, %p151
      %p153 = scmp.ne.s32.totalorder %s141, %s142
      %p154 = scmp.eq.s32.totalorder %s27, 1
      %p155 = por %p153, %p154
      %p157 = scmp.ne.s32.totalorder %s142, %s156
      %p158 = scmp.eq.s32.totalorder %s27, 0
      %p159 = por %p157, %p158
      %s161 = sadd.s32 %s160, 1
      %p164 = scmp.eq.s32.totalorder %s21, 1
      %p165 = scmp.ne.s32.totalorder %s160, %s162
      %p166 = scmp.eq.s32.totalorder %s21, 0
      %p167 = por %p165, %p166
      %p168 = scmp.ne.s32.totalorder %s160, %s162
      %p169 = scmp.eq.s32.totalorder %s26, 1
      %p170 = por %p168, %p169
      %p171 = scmp.ne.s32.totalorder %s162, %s163
      %p172 = scmp.eq.s32.totalorder %s26, 0
      %p173 = por %p171, %p172
      %p174 = scmp.ne.s32.totalorder %s162, %s163
      %p175 = scmp.eq.s32.totalorder %s27, 1
      %p176 = por %p174, %p175
      %p178 = scmp.ne.s32.totalorder %s163, %s177
      %p179 = scmp.eq.s32.totalorder %s27, 0
      %p180 = por %p178, %p179
      %s182 = sadd.s32 %s181, 1
      %p185 = scmp.eq.s32.totalorder %s21, 1
      %p186 = scmp.ne.s32.totalorder %s181, %s183
      %p187 = scmp.eq.s32.totalorder %s21, 0
      %p188 = por %p186, %p187
      %p189 = scmp.ne.s32.totalorder %s181, %s183
      %p190 = scmp.eq.s32.totalorder %s26, 1
      %p191 = por %p189, %p190
      %p192 = scmp.ne.s32.totalorder %s183, %s184
      %p193 = scmp.eq.s32.totalorder %s26, 0
      %p194 = por %p192, %p193
      %p195 = scmp.ne.s32.totalorder %s183, %s184
      %p196 = scmp.eq.s32.totalorder %s27, 1
      %p197 = por %p195, %p196
      %p199 = scmp.ne.s32.totalorder %s184, %s198
      %p200 = scmp.eq.s32.totalorder %s27, 0
      %p201 = por %p199, %p200
      %s202 = ssub.s32 %s21, %s28
      %p203 = scmp.eq.s32.totalorder %s202, 0
      %s205 = sadd.s32 %s204, 1
      %s206 = scalar_select %p203, %s204, %s205
      %p209 = pneg %p203
      %p210 = scmp.eq.s32.totalorder %s21, 1
      %p211 = por %p209, %p210
      %p212 = scmp.ne.s32.totalorder %s204, %s207
      %p213 = scmp.eq.s32.totalorder %s21, 0
      %p214 = por %p212, %p213
      %p215 = scmp.ne.s32.totalorder %s204, %s207
      %p216 = scmp.eq.s32.totalorder %s26, 1
      %p217 = por %p215, %p216
      %p218 = scmp.ne.s32.totalorder %s207, %s208
      %p219 = scmp.eq.s32.totalorder %s26, 0
      %p220 = por %p218, %p219
      %p221 = scmp.ne.s32.totalorder %s207, %s208
      %p222 = scmp.eq.s32.totalorder %s27, 1
      %p223 = por %p221, %p222
      %p225 = scmp.ne.s32.totalorder %s208, %s224
      %p226 = scmp.eq.s32.totalorder %s27, 0
      %p227 = por %p225, %p226
      %p228 = scmp.le.s32.totalorder 1, %s21
      %p229 = scmp.lt.s32.totalorder %s21, 3
      %p230 = pnand %p228, %p229
      %p231 = pneg %p230
      // Predicated region
      $region9: #{tpu_custom_call.1} parent=5 // pred_check
        _
      $region10: #{tpu_custom_call.1} parent=5 // pred_check_branch
        %233 = sbr.rel (%p230) target = $region12
      $region11: #{tpu_custom_call.1} parent=5 // pred_region
        %s234 = ssub.s32 %s21, 1
        // Predicated region
        $region13: #{tpu_custom_call.1} parent=11 // pred_check
          %p235 = pneg %p42
        $region14: #{tpu_custom_call.1} parent=11 // pred_check_branch
          %237 = sbr.rel (%p235) target = $region16
        $region15: #{tpu_custom_call.1} parent=11 // pred_region
          %239 = vsyncadd [#allocation5], 0
          %s241 = sshll.u32 %s0, 4
          %s242 = int_to_ptr.vmem [resolvable:$true] %s241
          %244 = dma.vmem_to_smem %s242, 16, [#allocation2], [#allocation5]
        $region16: #{tpu_custom_call.1} parent=11 // pred_fallthru
          _
        // Predicated region
        $region17: #{tpu_custom_call.1} parent=11 // pred_check
          %p245 = pneg %p89
        $region18: #{tpu_custom_call.1} parent=11 // pred_check_branch
          %247 = sbr.rel (%p245) target = $region20
        $region19: #{tpu_custom_call.1} parent=11 // pred_region
          _
        $region20: #{tpu_custom_call.1} parent=11 // pred_fallthru
          _
        // Predicated region
        $region21: #{tpu_custom_call.1} parent=11 // pred_check
          %p248 = pneg %p110
        $region22: #{tpu_custom_call.1} parent=11 // pred_check_branch
          %250 = sbr.rel (%p248) target = $region24
        $region23: #{tpu_custom_call.1} parent=11 // pred_region
          _
        $region24: #{tpu_custom_call.1} parent=11 // pred_fallthru
          _
        // Predicated region
        $region25: #{tpu_custom_call.1} parent=11 // pred_check
          %p251 = pneg %p131
        $region26: #{tpu_custom_call.1} parent=11 // pred_check_branch
          %253 = sbr.rel (%p251) target = $region28
        $region27: #{tpu_custom_call.1} parent=11 // pred_region
          _
        $region28: #{tpu_custom_call.1} parent=11 // pred_fallthru
          _
        // Predicated region
        $region29: #{tpu_custom_call.1} parent=11 // pred_check
          %p254 = pneg %p152
        $region30: #{tpu_custom_call.1} parent=11 // pred_check_branch
          %256 = sbr.rel (%p254) target = $region32
        $region31: #{tpu_custom_call.1} parent=11 // pred_region
          _
        $region32: #{tpu_custom_call.1} parent=11 // pred_fallthru
          _
        // Predicated region
        $region33: #{tpu_custom_call.1} parent=11 // pred_check
          %p257 = pneg %p173
        $region34: #{tpu_custom_call.1} parent=11 // pred_check_branch
          %259 = sbr.rel (%p257) target = $region36
        $region35: #{tpu_custom_call.1} parent=11 // pred_region
          _
        $region36: #{tpu_custom_call.1} parent=11 // pred_fallthru
          _
        // Predicated region
        $region37: #{tpu_custom_call.1} parent=11 // pred_check
          %p260 = pneg %p194
        $region38: #{tpu_custom_call.1} parent=11 // pred_check_branch
          %262 = sbr.rel (%p260) target = $region40
        $region39: #{tpu_custom_call.1} parent=11 // pred_region
          _
        $region40: #{tpu_custom_call.1} parent=11 // pred_fallthru
          _
      $region12: #{tpu_custom_call.1} parent=5 // pred_fallthru
        _
      %p263 = scmp.lt.s32.totalorder %s21, 2
      // Predicated region
      $region41: #{tpu_custom_call.1} parent=5 // pred_check
        %p264 = pneg %p263
      $region42: #{tpu_custom_call.1} parent=5 // pred_check_branch
        %266 = sbr.rel (%p264) target = $region44
      $region43: #{tpu_custom_call.1} parent=5 // pred_region
        // Predicated region
        $region45: #{tpu_custom_call.1} parent=43 // pred_check
          %p267 = pneg %p62
        $region46: #{tpu_custom_call.1} parent=43 // pred_check_branch
          %269 = sbr.rel (%p267) target = $region48
        $region47: #{tpu_custom_call.1} parent=43 // pred_region
          %s270 = sand.u32 %s52, 1
          %s271 = scalar_lea.sflag [#allocation3], %s270
          %s272 = sand.u32 %s52, 1
          %s273 = smul.addr %s272, 64
          %s274 = scalar_lea.vmem [#allocation6], %s273
          %276 = vsyncadd %s271, 0
          %s277 = smul.addr %s21, 8
          %s278 = smul.addr %s277, 8
          %s279 = scalar_lea.hbm %s1, %s278
          %s280 = sshll.u32 %s279, 4
          %s281 = int_to_ptr.hbm [resolvable:$true] %s280
          %s282 = sshll.u32 %s274, 4
          %s283 = int_to_ptr.vmem [resolvable:$true] %s282
          %288 = dma.hbm_to_vmem [thread:$0]  %s281, 1024, %s283, %s271, 128, 128, 8
        $region48: #{tpu_custom_call.1} parent=43 // pred_fallthru
          _
      $region44: #{tpu_custom_call.1} parent=5 // pred_fallthru
        _
      %p289 = scmp.le.s32.totalorder 1, %s21
      %p290 = scmp.lt.s32.totalorder %s21, 3
      %p291 = pnand %p289, %p290
      %p292 = pneg %p291
      // Predicated region
      $region49: #{tpu_custom_call.1} parent=5 // pred_check
        _
      $region50: #{tpu_custom_call.1} parent=5 // pred_check_branch
        %294 = sbr.rel (%p291) target = $region52
      $region51: #{tpu_custom_call.1} parent=5 // pred_region
        %s295 = ssub.s32 %s21, 1
        // Predicated region
        $region53: #{tpu_custom_call.1} parent=51 // pred_check
          %p296 = pneg %p42
        $region54: #{tpu_custom_call.1} parent=51 // pred_check_branch
          %298 = sbr.rel (%p296) target = $region56
        $region55: #{tpu_custom_call.1} parent=51 // pred_region
          %300 = dma.done [#allocation5], 16
        $region56: #{tpu_custom_call.1} parent=51 // pred_fallthru
          _
        %s301 = sand.u32 %s55, 1
        %s302 = scalar_lea.sflag [#allocation3], %s301
        %s303 = sand.u32 %s55, 1
        %s304 = smul.addr %s303, 64
        %s305 = scalar_lea.vmem [#allocation6], %s304
        // Predicated region
        $region57: #{tpu_custom_call.1} parent=51 // pred_check
          %p306 = pneg %p68
        $region58: #{tpu_custom_call.1} parent=51 // pred_check_branch
          %308 = sbr.rel (%p306) target = $region60
        $region59: #{tpu_custom_call.1} parent=51 // pred_region
          %310 = dma.done %s302, 1024
        $region60: #{tpu_custom_call.1} parent=51 // pred_fallthru
          _
        %311 = sfence
        %p312 = pneg %p42
        %p313 = pneg %p39
        %s314 = sand.u32 %s55, 1
        %s315 = scalar_lea.sflag [#allocation3], %s314
        %s316 = sand.u32 %s55, 1
        %s317 = smul.addr %s316, 64
        %s318 = scalar_lea.vmem [#allocation6], %s317
        %p319 = pneg %p68
        %p320 = pneg %p65
        %p321 = pneg %p89
        %p322 = pneg %p86
        %p323 = pneg %p110
        %p324 = pneg %p107
        %p325 = pneg %p131
        %p326 = pneg %p128
        %p327 = pneg %p152
        %p328 = pneg %p149
        %p329 = pneg %p173
        %p330 = pneg %p170
        %p331 = pneg %p194
        %p332 = pneg %p191
        %p333 = pneg %p220
        %p334 = pneg %p217
        %s335 = sand.u32 %s207, 1
        %s336 = scalar_lea.sflag [#allocation4], %s335
        %s337 = sand.u32 %s207, 1
        %s338 = smul.addr %s337, 128
        %s339 = scalar_lea.vmem [#allocation7], %s338
        %v340 = vld [vmem:[%s305] sm:$0xff]
        %v341 = vld [vmem:[%s305 + $0x8] sm:$0xff]
        %v342 = vld [vmem:[%s305 + $0x10] sm:$0xff]
        %v343 = vld [vmem:[%s305 + $0x18] sm:$0xff]
        %v344 = vld [vmem:[%s305 + $0x20] sm:$0xff]
        %v345 = vld [vmem:[%s305 + $0x28] sm:$0xff]
        %v346 = vld [vmem:[%s305 + $0x30] sm:$0xff]
        %v347 = vld [vmem:[%s305 + $0x38] sm:$0xff]
        %v348 = vld [vmem:[%s3] sm:$0xff]
        %v349 = vld [vmem:[%s3 + $0x8] sm:$0xff]
        %vm350 = vcmask 130048
        %v352 = vsel %vm350, %v340, 0
        %v355 = vsel %vm350, %v341, 0
        %v358 = vsel %vm350, %v342, 0
        %v361 = vsel %vm350, %v343, 0
        %v364 = vsel %vm350, %v344, 0
        %v367 = vsel %vm350, %v345, 0
        %v370 = vsel %vm350, %v346, 0
        %v373 = vsel %vm350, %v347, 0
        %375 = vmatpush.msra.mxu0 0.0
        %376 = vmatpush.msra.mxu0 0.0
        %377 = vmatpush.msra.mxu0 0.0
        %378 = vmatpush.msra.mxu0 0.0
        %379 = vmatpush.msra.mxu0 0.0
        %380 = vmatpush.msra.mxu0 0.0
        %381 = vmatpush.msra.mxu0 0.0
        %382 = vmatpush.msra.mxu0 0.0
        %383 = vmatpush.msra.mxu0 0.0
        %384 = vmatpush.msra.mxu0 0.0
        %385 = vmatpush.msra.mxu0 0.0
        %386 = vmatpush.msra.mxu0 0.0
        %387 = vmatpush.msra.mxu0 0.0
        %388 = vmatpush.msra.mxu0 0.0
        %389 = vmatpush.msra.mxu0 %v349
        %390 = vmatpush.msra.mxu0 %v348
        %391 = vmatmul.f32.gmra.mxu0 %v352
        %v392 = vpop.f32.mrf.mxu0
        %v393 = vadd.f32 0.0, %v392
        %394 = vmatmul.f32.gmra.mxu0 %v355
        %v395 = vpop.f32.mrf.mxu0
        %v396 = vadd.f32 0.0, %v395
        %397 = vmatmul.f32.gmra.mxu0 %v358
        %v398 = vpop.f32.mrf.mxu0
        %v399 = vadd.f32 0.0, %v398
        %400 = vmatmul.f32.gmra.mxu0 %v361
        %v401 = vpop.f32.mrf.mxu0
        %v402 = vadd.f32 0.0, %v401
        %403 = vmatmul.f32.gmra.mxu0 %v364
        %v404 = vpop.f32.mrf.mxu0
        %v405 = vadd.f32 0.0, %v404
        %406 = vmatmul.f32.gmra.mxu0 %v367
        %v407 = vpop.f32.mrf.mxu0
        %v408 = vadd.f32 0.0, %v407
        %409 = vmatmul.f32.gmra.mxu0 %v370
        %v410 = vpop.f32.mrf.mxu0
        %v411 = vadd.f32 0.0, %v410
        %412 = vmatmul.f32.gmra.mxu0 %v373
        %v413 = vpop.f32.mrf.mxu0
        %v414 = vadd.f32 0.0, %v413
        %415 = vdwg.mxu0
        %v416 = vld [vmem:[%s5] sm:$0xff]
        %v417 = vld [vmem:[%s5 + $0x8] sm:$0xff]
        %418 = vmatpush.msra.mxu0 0.0
        %419 = vmatpush.msra.mxu0 0.0
        %420 = vmatpush.msra.mxu0 0.0
        %421 = vmatpush.msra.mxu0 0.0
        %422 = vmatpush.msra.mxu0 0.0
        %423 = vmatpush.msra.mxu0 0.0
        %424 = vmatpush.msra.mxu0 0.0
        %425 = vmatpush.msra.mxu0 0.0
        %426 = vmatpush.msra.mxu0 0.0
        %427 = vmatpush.msra.mxu0 0.0
        %428 = vmatpush.msra.mxu0 0.0
        %429 = vmatpush.msra.mxu0 0.0
        %430 = vmatpush.msra.mxu0 0.0
        %431 = vmatpush.msra.mxu0 0.0
        %432 = vmatpush.msra.mxu0 %v417
        %433 = vmatpush.msra.mxu0 %v416
        %434 = vmatmul.f32.gmra.mxu0 %v352
        %v435 = vpop.f32.mrf.mxu0
        %v436 = vadd.f32 0.0, %v435
        %437 = vmatmul.f32.gmra.mxu0 %v355
        %v438 = vpop.f32.mrf.mxu0
        %v439 = vadd.f32 0.0, %v438
        %440 = vmatmul.f32.gmra.mxu0 %v358
        %v441 = vpop.f32.mrf.mxu0
        %v442 = vadd.f32 0.0, %v441
        %443 = vmatmul.f32.gmra.mxu0 %v361
        %v444 = vpop.f32.mrf.mxu0
        %v445 = vadd.f32 0.0, %v444
        %446 = vmatmul.f32.gmra.mxu0 %v364
        %v447 = vpop.f32.mrf.mxu0
        %v448 = vadd.f32 0.0, %v447
        %449 = vmatmul.f32.gmra.mxu0 %v367
        %v450 = vpop.f32.mrf.mxu0
        %v451 = vadd.f32 0.0, %v450
        %452 = vmatmul.f32.gmra.mxu0 %v370
        %v453 = vpop.f32.mrf.mxu0
        %v454 = vadd.f32 0.0, %v453
        %455 = vmatmul.f32.gmra.mxu0 %v373
        %v456 = vpop.f32.mrf.mxu0
        %v457 = vadd.f32 0.0, %v456
        %458 = vdwg.mxu0
        %v459 = vld [vmem:[%s7] sm:$0xff]
        %v460 = vld [vmem:[%s7 + $0x8] sm:$0xff]
        %461 = vmatpush.msra.mxu0 0.0
        %462 = vmatpush.msra.mxu0 0.0
        %463 = vmatpush.msra.mxu0 0.0
        %464 = vmatpush.msra.mxu0 0.0
        %465 = vmatpush.msra.mxu0 0.0
        %466 = vmatpush.msra.mxu0 0.0
        %467 = vmatpush.msra.mxu0 0.0
        %468 = vmatpush.msra.mxu0 0.0
        %469 = vmatpush.msra.mxu0 0.0
        %470 = vmatpush.msra.mxu0 0.0
        %471 = vmatpush.msra.mxu0 0.0
        %472 = vmatpush.msra.mxu0 0.0
        %473 = vmatpush.msra.mxu0 0.0
        %474 = vmatpush.msra.mxu0 0.0
        %475 = vmatpush.msra.mxu0 %v460
        %476 = vmatpush.msra.mxu0 %v459
        %477 = vmatmul.f32.gmra.mxu0 %v352
        %v478 = vpop.f32.mrf.mxu0
        %v479 = vadd.f32 0.0, %v478
        %480 = vmatmul.f32.gmra.mxu0 %v355
        %v481 = vpop.f32.mrf.mxu0
        %v482 = vadd.f32 0.0, %v481
        %483 = vmatmul.f32.gmra.mxu0 %v358
        %v484 = vpop.f32.mrf.mxu0
        %v485 = vadd.f32 0.0, %v484
        %486 = vmatmul.f32.gmra.mxu0 %v361
        %v487 = vpop.f32.mrf.mxu0
        %v488 = vadd.f32 0.0, %v487
        %489 = vmatmul.f32.gmra.mxu0 %v364
        %v490 = vpop.f32.mrf.mxu0
        %v491 = vadd.f32 0.0, %v490
        %492 = vmatmul.f32.gmra.mxu0 %v367
        %v493 = vpop.f32.mrf.mxu0
        %v494 = vadd.f32 0.0, %v493
        %495 = vmatmul.f32.gmra.mxu0 %v370
        %v496 = vpop.f32.mrf.mxu0
        %v497 = vadd.f32 0.0, %v496
        %498 = vmatmul.f32.gmra.mxu0 %v373
        %v499 = vpop.f32.mrf.mxu0
        %v500 = vadd.f32 0.0, %v499
        %501 = vdwg.mxu0
        %v502 = vld [vmem:[%s2] sm:$0xff]
        %v503 = vld [vmem:[%s2 + $0x8] sm:$0xff]
        %v504 = vld [vmem:[%s2 + $0x10] sm:$0xff]
        %v505 = vld [vmem:[%s2 + $0x18] sm:$0xff]
        %v507 = vsel %vm350, %v502, 0
        %v510 = vsel %vm350, %v503, 0
        %v513 = vsel %vm350, %v504, 0
        %v516 = vsel %vm350, %v505, 0
        %518 = vmatpush.msra.mxu0 0.0
        %519 = vmatpush.msra.mxu0 0.0
        %520 = vmatpush.msra.mxu0 0.0
        %521 = vmatpush.msra.mxu0 0.0
        %522 = vmatpush.msra.mxu0 0.0
        %523 = vmatpush.msra.mxu0 0.0
        %524 = vmatpush.msra.mxu0 0.0
        %525 = vmatpush.msra.mxu0 0.0
        %526 = vmatpush.msra.mxu0 0.0
        %527 = vmatpush.msra.mxu0 0.0
        %528 = vmatpush.msra.mxu0 0.0
        %529 = vmatpush.msra.mxu0 0.0
        %530 = vmatpush.msra.mxu0 0.0
        %531 = vmatpush.msra.mxu0 0.0
        %532 = vmatpush.msra.mxu0 %v396
        %533 = vmatpush.msra.mxu0 %v393
        %534 = vmatmul.f32.gmra.mxu0 %v507
        %v535 = vpop.f32.mrf.mxu0
        %v536 = vadd.f32 0.0, %v535
        %537 = vmatmul.f32.gmra.mxu0 %v510
        %v538 = vpop.f32.mrf.mxu0
        %v539 = vadd.f32 0.0, %v538
        %540 = vmatmul.f32.gmra.mxu0 %v513
        %v541 = vpop.f32.mrf.mxu0
        %v542 = vadd.f32 0.0, %v541
        %543 = vmatmul.f32.gmra.mxu0 %v516
        %v544 = vpop.f32.mrf.mxu0
        %v545 = vadd.f32 0.0, %v544
        %546 = vdwg.mxu0
        %v547 = vld [vmem:[%s4] sm:$0xff]
        %v548 = vld [vmem:[%s4 + $0x8] sm:$0xff]
        %v549 = vld [vmem:[%s4 + $0x10] sm:$0xff]
        %v550 = vld [vmem:[%s4 + $0x18] sm:$0xff]
        %v552 = vsel %vm350, %v547, 0
        %v555 = vsel %vm350, %v548, 0
        %v558 = vsel %vm350, %v549, 0
        %v561 = vsel %vm350, %v550, 0
        %563 = vmatpush.msra.mxu0 0.0
        %564 = vmatpush.msra.mxu0 0.0
        %565 = vmatpush.msra.mxu0 0.0
        %566 = vmatpush.msra.mxu0 0.0
        %567 = vmatpush.msra.mxu0 0.0
        %568 = vmatpush.msra.mxu0 0.0
        %569 = vmatpush.msra.mxu0 0.0
        %570 = vmatpush.msra.mxu0 0.0
        %571 = vmatpush.msra.mxu0 0.0
        %572 = vmatpush.msra.mxu0 0.0
        %573 = vmatpush.msra.mxu0 0.0
        %574 = vmatpush.msra.mxu0 0.0
        %575 = vmatpush.msra.mxu0 0.0
        %576 = vmatpush.msra.mxu0 0.0
        %577 = vmatpush.msra.mxu0 %v439
        %578 = vmatpush.msra.mxu0 %v436
        %579 = vmatmul.f32.gmra.mxu0 %v552
        %v580 = vpop.f32.mrf.mxu0
        %v581 = vadd.f32 0.0, %v580
        %582 = vmatmul.f32.gmra.mxu0 %v555
        %v583 = vpop.f32.mrf.mxu0
        %v584 = vadd.f32 0.0, %v583
        %585 = vmatmul.f32.gmra.mxu0 %v558
        %v586 = vpop.f32.mrf.mxu0
        %v587 = vadd.f32 0.0, %v586
        %588 = vmatmul.f32.gmra.mxu0 %v561
        %v589 = vpop.f32.mrf.mxu0
        %v590 = vadd.f32 0.0, %v589
        %591 = vdwg.mxu0
        %v592 = vld [vmem:[%s6] sm:$0xff]
        %v593 = vld [vmem:[%s6 + $0x8] sm:$0xff]
        %v594 = vld [vmem:[%s6 + $0x10] sm:$0xff]
        %v595 = vld [vmem:[%s6 + $0x18] sm:$0xff]
        %v597 = vsel %vm350, %v592, 0
        %v600 = vsel %vm350, %v593, 0
        %v603 = vsel %vm350, %v594, 0
        %v606 = vsel %vm350, %v595, 0
        %608 = vmatpush.msra.mxu0 0.0
        %609 = vmatpush.msra.mxu0 0.0
        %610 = vmatpush.msra.mxu0 0.0
        %611 = vmatpush.msra.mxu0 0.0
        %612 = vmatpush.msra.mxu0 0.0
        %613 = vmatpush.msra.mxu0 0.0
        %614 = vmatpush.msra.mxu0 0.0
        %615 = vmatpush.msra.mxu0 0.0
        %616 = vmatpush.msra.mxu0 0.0
        %617 = vmatpush.msra.mxu0 0.0
        %618 = vmatpush.msra.mxu0 0.0
        %619 = vmatpush.msra.mxu0 0.0
        %620 = vmatpush.msra.mxu0 0.0
        %621 = vmatpush.msra.mxu0 0.0
        %622 = vmatpush.msra.mxu0 %v482
        %623 = vmatpush.msra.mxu0 %v479
        %624 = vmatmul.f32.gmra.mxu0 %v597
        %v625 = vpop.f32.mrf.mxu0
        %v626 = vadd.f32 0.0, %v625
        %627 = vmatmul.f32.gmra.mxu0 %v600
        %v628 = vpop.f32.mrf.mxu0
        %v629 = vadd.f32 0.0, %v628
        %630 = vmatmul.f32.gmra.mxu0 %v603
        %v631 = vpop.f32.mrf.mxu0
        %v632 = vadd.f32 0.0, %v631
        %633 = vmatmul.f32.gmra.mxu0 %v606
        %v634 = vpop.f32.mrf.mxu0
        %v635 = vadd.f32 0.0, %v634
        %636 = vdwg.mxu0
        %s637 = sld [smem:[#allocation2]]
        %s638 = sld [smem:[#allocation2 + $0x1]]
        %v639 = vsub.f32 %v581, %v536
        %v640 = vsub.f32 %v584, %v539
        %v641 = vsub.f32 %v587, %v542
        %v642 = vsub.f32 %v590, %v545
        %v643 = vstv %s637
        %v644 = vmul.f32 %v643, %v639
        %v645 = vmul.f32 %v643, %v640
        %v646 = vmul.f32 %v643, %v641
        %v647 = vmul.f32 %v643, %v642
        %v648 = vstv %s638
        %v649 = vadd.f32 %v644, %v648
        %v650 = vadd.f32 %v645, %v648
        %v651 = vadd.f32 %v646, %v648
        %v652 = vadd.f32 %v647, %v648
        %v653 = vmax.f32 %v649, -3.0
        %v654 = vmax.f32 %v650, -3.0
        %v655 = vmax.f32 %v651, -3.0
        %v656 = vmax.f32 %v652, -3.0
        %v657 = vmin.f32 %v653, 3.0
        %v658 = vmin.f32 %v654, 3.0
        %v659 = vmin.f32 %v655, 3.0
        %v660 = vmin.f32 %v656, 3.0
        %v661 = vtanh.pop %v657
        %v662 = vtanh.pop %v658
        %v663 = vtanh.pop %v659
        %v664 = vtanh.pop %v660
        %v665 = vadd.f32 %v536, %v661
        %v666 = vadd.f32 %v539, %v662
        %v667 = vadd.f32 %v542, %v663
        %v668 = vadd.f32 %v545, %v664
        %s669 = sld [smem:[#allocation2 + $0x2]]
        %s670 = sld [smem:[#allocation2 + $0x3]]
        %v671 = vsub.f32 %v626, %v581
        %v672 = vsub.f32 %v629, %v584
        %v673 = vsub.f32 %v632, %v587
        %v674 = vsub.f32 %v635, %v590
        %v675 = vstv %s669
        %v676 = vmul.f32 %v675, %v671
        %v677 = vmul.f32 %v675, %v672
        %v678 = vmul.f32 %v675, %v673
        %v679 = vmul.f32 %v675, %v674
        %v680 = vstv %s670
        %v681 = vadd.f32 %v676, %v680
        %v682 = vadd.f32 %v677, %v680
        %v683 = vadd.f32 %v678, %v680
        %v684 = vadd.f32 %v679, %v680
        %v685 = vmax.f32 %v681, -3.0
        %v686 = vmax.f32 %v682, -3.0
        %v687 = vmax.f32 %v683, -3.0
        %v688 = vmax.f32 %v684, -3.0
        %v689 = vmin.f32 %v685, 3.0
        %v690 = vmin.f32 %v686, 3.0
        %v691 = vmin.f32 %v687, 3.0
        %v692 = vmin.f32 %v688, 3.0
        %v693 = vtanh.pop %v689
        %v694 = vtanh.pop %v690
        %v695 = vtanh.pop %v691
        %v696 = vtanh.pop %v692
        %v697 = vadd.f32 %v665, %v693
        %v698 = vadd.f32 %v666, %v694
        %v699 = vadd.f32 %v667, %v695
        %v700 = vadd.f32 %v668, %v696
        %vm701 = vcmask 261120
        %702 = vst.msk [vmem:[%s339] sm:$0xff] %vm701, %v697
        %703 = vst.msk [vmem:[%s339 + $0x8] sm:$0xff] %vm701, %v698
        %704 = vst.msk [vmem:[%s339 + $0x10] sm:$0xff] %vm701, %v699
        %705 = vst.msk [vmem:[%s339 + $0x18] sm:$0xff] %vm701, %v700
        %v706 = vld [vmem:[%s2] sm:$0xff]
        %v707 = vld [vmem:[%s2 + $0x8] sm:$0xff]
        %v708 = vld [vmem:[%s2 + $0x10] sm:$0xff]
        %v709 = vld [vmem:[%s2 + $0x18] sm:$0xff]
        %v711 = vsel %vm350, %v706, 0
        %v714 = vsel %vm350, %v707, 0
        %v717 = vsel %vm350, %v708, 0
        %v720 = vsel %vm350, %v709, 0
        %722 = vmatpush.msra.mxu0 0.0
        %723 = vmatpush.msra.mxu0 0.0
        %724 = vmatpush.msra.mxu0 0.0
        %725 = vmatpush.msra.mxu0 0.0
        %726 = vmatpush.msra.mxu0 0.0
        %727 = vmatpush.msra.mxu0 0.0
        %728 = vmatpush.msra.mxu0 0.0
        %729 = vmatpush.msra.mxu0 0.0
        %730 = vmatpush.msra.mxu0 0.0
        %731 = vmatpush.msra.mxu0 0.0
        %732 = vmatpush.msra.mxu0 0.0
        %733 = vmatpush.msra.mxu0 0.0
        %734 = vmatpush.msra.mxu0 0.0
        %735 = vmatpush.msra.mxu0 0.0
        %736 = vmatpush.msra.mxu0 %v402
        %737 = vmatpush.msra.mxu0 %v399
        %738 = vmatmul.f32.gmra.mxu0 %v711
        %v739 = vpop.f32.mrf.mxu0
        %v740 = vadd.f32 0.0, %v739
        %741 = vmatmul.f32.gmra.mxu0 %v714
        %v742 = vpop.f32.mrf.mxu0
        %v743 = vadd.f32 0.0, %v742
        %744 = vmatmul.f32.gmra.mxu0 %v717
        %v745 = vpop.f32.mrf.mxu0
        %v746 = vadd.f32 0.0, %v745
        %747 = vmatmul.f32.gmra.mxu0 %v720
        %v748 = vpop.f32.mrf.mxu0
        %v749 = vadd.f32 0.0, %v748
        %750 = vdwg.mxu0
        %v751 = vld [vmem:[%s4] sm:$0xff]
        %v752 = vld [vmem:[%s4 + $0x8] sm:$0xff]
        %v753 = vld [vmem:[%s4 + $0x10] sm:$0xff]
        %v754 = vld [vmem:[%s4 + $0x18] sm:$0xff]
        %v756 = vsel %vm350, %v751, 0
        %v759 = vsel %vm350, %v752, 0
        %v762 = vsel %vm350, %v753, 0
        %v765 = vsel %vm350, %v754, 0
        %767 = vmatpush.msra.mxu0 0.0
        %768 = vmatpush.msra.mxu0 0.0
        %769 = vmatpush.msra.mxu0 0.0
        %770 = vmatpush.msra.mxu0 0.0
        %771 = vmatpush.msra.mxu0 0.0
        %772 = vmatpush.msra.mxu0 0.0
        %773 = vmatpush.msra.mxu0 0.0
        %774 = vmatpush.msra.mxu0 0.0
        %775 = vmatpush.msra.mxu0 0.0
        %776 = vmatpush.msra.mxu0 0.0
        %777 = vmatpush.msra.mxu0 0.0
        %778 = vmatpush.msra.mxu0 0.0
        %779 = vmatpush.msra.mxu0 0.0
        %780 = vmatpush.msra.mxu0 0.0
        %781 = vmatpush.msra.mxu0 %v445
        %782 = vmatpush.msra.mxu0 %v442
        %783 = vmatmul.f32.gmra.mxu0 %v756
        %v784 = vpop.f32.mrf.mxu0
        %v785 = vadd.f32 0.0, %v784
        %786 = vmatmul.f32.gmra.mxu0 %v759
        %v787 = vpop.f32.mrf.mxu0
        %v788 = vadd.f32 0.0, %v787
        %789 = vmatmul.f32.gmra.mxu0 %v762
        %v790 = vpop.f32.mrf.mxu0
        %v791 = vadd.f32 0.0, %v790
        %792 = vmatmul.f32.gmra.mxu0 %v765
        %v793 = vpop.f32.mrf.mxu0
        %v794 = vadd.f32 0.0, %v793
        %795 = vdwg.mxu0
        %v796 = vld [vmem:[%s6] sm:$0xff]
        %v797 = vld [vmem:[%s6 + $0x8] sm:$0xff]
        %v798 = vld [vmem:[%s6 + $0x10] sm:$0xff]
        %v799 = vld [vmem:[%s6 + $0x18] sm:$0xff]
        %v801 = vsel %vm350, %v796, 0
        %v804 = vsel %vm350, %v797, 0
        %v807 = vsel %vm350, %v798, 0
        %v810 = vsel %vm350, %v799, 0
        %812 = vmatpush.msra.mxu0 0.0
        %813 = vmatpush.msra.mxu0 0.0
        %814 = vmatpush.msra.mxu0 0.0
        %815 = vmatpush.msra.mxu0 0.0
        %816 = vmatpush.msra.mxu0 0.0
        %817 = vmatpush.msra.mxu0 0.0
        %818 = vmatpush.msra.mxu0 0.0
        %819 = vmatpush.msra.mxu0 0.0
        %820 = vmatpush.msra.mxu0 0.0
        %821 = vmatpush.msra.mxu0 0.0
        %822 = vmatpush.msra.mxu0 0.0
        %823 = vmatpush.msra.mxu0 0.0
        %824 = vmatpush.msra.mxu0 0.0
        %825 = vmatpush.msra.mxu0 0.0
        %826 = vmatpush.msra.mxu0 %v488
        %827 = vmatpush.msra.mxu0 %v485
        %828 = vmatmul.f32.gmra.mxu0 %v801
        %v829 = vpop.f32.mrf.mxu0
        %v830 = vadd.f32 0.0, %v829
        %831 = vmatmul.f32.gmra.mxu0 %v804
        %v832 = vpop.f32.mrf.mxu0
        %v833 = vadd.f32 0.0, %v832
        %834 = vmatmul.f32.gmra.mxu0 %v807
        %v835 = vpop.f32.mrf.mxu0
        %v836 = vadd.f32 0.0, %v835
        %837 = vmatmul.f32.gmra.mxu0 %v810
        %v838 = vpop.f32.mrf.mxu0
        %v839 = vadd.f32 0.0, %v838
        %840 = vdwg.mxu0
        %s841 = sld [smem:[#allocation2]]
        %s842 = sld [smem:[#allocation2 + $0x1]]
        %v843 = vsub.f32 %v785, %v740
        %v844 = vsub.f32 %v788, %v743
        %v845 = vsub.f32 %v791, %v746
        %v846 = vsub.f32 %v794, %v749
        %v847 = vstv %s841
        %v848 = vmul.f32 %v847, %v843
        %v849 = vmul.f32 %v847, %v844
        %v850 = vmul.f32 %v847, %v845
        %v851 = vmul.f32 %v847, %v846
        %v852 = vstv %s842
        %v853 = vadd.f32 %v848, %v852
        %v854 = vadd.f32 %v849, %v852
        %v855 = vadd.f32 %v850, %v852
        %v856 = vadd.f32 %v851, %v852
        %v857 = vmax.f32 %v853, -3.0
        %v858 = vmax.f32 %v854, -3.0
        %v859 = vmax.f32 %v855, -3.0
        %v860 = vmax.f32 %v856, -3.0
        %v861 = vmin.f32 %v857, 3.0
        %v862 = vmin.f32 %v858, 3.0
        %v863 = vmin.f32 %v859, 3.0
        %v864 = vmin.f32 %v860, 3.0
        %v865 = vtanh.pop %v861
        %v866 = vtanh.pop %v862
        %v867 = vtanh.pop %v863
        %v868 = vtanh.pop %v864
        %v869 = vadd.f32 %v740, %v865
        %v870 = vadd.f32 %v743, %v866
        %v871 = vadd.f32 %v746, %v867
        %v872 = vadd.f32 %v749, %v868
        %s873 = sld [smem:[#allocation2 + $0x2]]
        %s874 = sld [smem:[#allocation2 + $0x3]]
        %v875 = vsub.f32 %v830, %v785
        %v876 = vsub.f32 %v833, %v788
        %v877 = vsub.f32 %v836, %v791
        %v878 = vsub.f32 %v839, %v794
        %v879 = vstv %s873
        %v880 = vmul.f32 %v879, %v875
        %v881 = vmul.f32 %v879, %v876
        %v882 = vmul.f32 %v879, %v877
        %v883 = vmul.f32 %v879, %v878
        %v884 = vstv %s874
        %v885 = vadd.f32 %v880, %v884
        %v886 = vadd.f32 %v881, %v884
        %v887 = vadd.f32 %v882, %v884
        %v888 = vadd.f32 %v883, %v884
        %v889 = vmax.f32 %v885, -3.0
        %v890 = vmax.f32 %v886, -3.0
        %v891 = vmax.f32 %v887, -3.0
        %v892 = vmax.f32 %v888, -3.0
        %v893 = vmin.f32 %v889, 3.0
        %v894 = vmin.f32 %v890, 3.0
        %v895 = vmin.f32 %v891, 3.0
        %v896 = vmin.f32 %v892, 3.0
        %v897 = vtanh.pop %v893
        %v898 = vtanh.pop %v894
        %v899 = vtanh.pop %v895
        %v900 = vtanh.pop %v896
        %v901 = vadd.f32 %v869, %v897
        %v902 = vadd.f32 %v870, %v898
        %v903 = vadd.f32 %v871, %v899
        %v904 = vadd.f32 %v872, %v900
        %s905 = scalar_lea.vmem %s339, 32 [#allocation7]
        %906 = vst.msk [vmem:[%s905] sm:$0xff] %vm701, %v901
        %907 = vst.msk [vmem:[%s905 + $0x8] sm:$0xff] %vm701, %v902
        %908 = vst.msk [vmem:[%s905 + $0x10] sm:$0xff] %vm701, %v903
        %909 = vst.msk [vmem:[%s905 + $0x18] sm:$0xff] %vm701, %v904
        %v910 = vld [vmem:[%s2] sm:$0xff]
        %v911 = vld [vmem:[%s2 + $0x8] sm:$0xff]
        %v912 = vld [vmem:[%s2 + $0x10] sm:$0xff]
        %v913 = vld [vmem:[%s2 + $0x18] sm:$0xff]
        %v915 = vsel %vm350, %v910, 0
        %v918 = vsel %vm350, %v911, 0
        %v921 = vsel %vm350, %v912, 0
        %v924 = vsel %vm350, %v913, 0
        %926 = vmatpush.msra.mxu0 0.0
        %927 = vmatpush.msra.mxu0 0.0
        %928 = vmatpush.msra.mxu0 0.0
        %929 = vmatpush.msra.mxu0 0.0
        %930 = vmatpush.msra.mxu0 0.0
        %931 = vmatpush.msra.mxu0 0.0
        %932 = vmatpush.msra.mxu0 0.0
        %933 = vmatpush.msra.mxu0 0.0
        %934 = vmatpush.msra.mxu0 0.0
        %935 = vmatpush.msra.mxu0 0.0
        %936 = vmatpush.msra.mxu0 0.0
        %937 = vmatpush.msra.mxu0 0.0
        %938 = vmatpush.msra.mxu0 0.0
        %939 = vmatpush.msra.mxu0 0.0
        %940 = vmatpush.msra.mxu0 %v408
        %941 = vmatpush.msra.mxu0 %v405
        %942 = vmatmul.f32.gmra.mxu0 %v915
        %v943 = vpop.f32.mrf.mxu0
        %v944 = vadd.f32 0.0, %v943
        %945 = vmatmul.f32.gmra.mxu0 %v918
        %v946 = vpop.f32.mrf.mxu0
        %v947 = vadd.f32 0.0, %v946
        %948 = vmatmul.f32.gmra.mxu0 %v921
        %v949 = vpop.f32.mrf.mxu0
        %v950 = vadd.f32 0.0, %v949
        %951 = vmatmul.f32.gmra.mxu0 %v924
        %v952 = vpop.f32.mrf.mxu0
        %v953 = vadd.f32 0.0, %v952
        %954 = vdwg.mxu0
        %v955 = vld [vmem:[%s4] sm:$0xff]
        %v956 = vld [vmem:[%s4 + $0x8] sm:$0xff]
        %v957 = vld [vmem:[%s4 + $0x10] sm:$0xff]
        %v958 = vld [vmem:[%s4 + $0x18] sm:$0xff]
        %v960 = vsel %vm350, %v955, 0
        %v963 = vsel %vm350, %v956, 0
        %v966 = vsel %vm350, %v957, 0
        %v969 = vsel %vm350, %v958, 0
        %971 = vmatpush.msra.mxu0 0.0
        %972 = vmatpush.msra.mxu0 0.0
        %973 = vmatpush.msra.mxu0 0.0
        %974 = vmatpush.msra.mxu0 0.0
        %975 = vmatpush.msra.mxu0 0.0
        %976 = vmatpush.msra.mxu0 0.0
        %977 = vmatpush.msra.mxu0 0.0
        %978 = vmatpush.msra.mxu0 0.0
        %979 = vmatpush.msra.mxu0 0.0
        %980 = vmatpush.msra.mxu0 0.0
        %981 = vmatpush.msra.mxu0 0.0
        %982 = vmatpush.msra.mxu0 0.0
        %983 = vmatpush.msra.mxu0 0.0
        %984 = vmatpush.msra.mxu0 0.0
        %985 = vmatpush.msra.mxu0 %v451
        %986 = vmatpush.msra.mxu0 %v448
        %987 = vmatmul.f32.gmra.mxu0 %v960
        %v988 = vpop.f32.mrf.mxu0
        %v989 = vadd.f32 0.0, %v988
        %990 = vmatmul.f32.gmra.mxu0 %v963
        %v991 = vpop.f32.mrf.mxu0
        %v992 = vadd.f32 0.0, %v991
        %993 = vmatmul.f32.gmra.mxu0 %v966
        %v994 = vpop.f32.mrf.mxu0
        %v995 = vadd.f32 0.0, %v994
        %996 = vmatmul.f32.gmra.mxu0 %v969
        %v997 = vpop.f32.mrf.mxu0
        %v998 = vadd.f32 0.0, %v997
        %999 = vdwg.mxu0
        %v1000 = vld [vmem:[%s6] sm:$0xff]
        %v1001 = vld [vmem:[%s6 + $0x8] sm:$0xff]
        %v1002 = vld [vmem:[%s6 + $0x10] sm:$0xff]
        %v1003 = vld [vmem:[%s6 + $0x18] sm:$0xff]
        %v1005 = vsel %vm350, %v1000, 0
        %v1008 = vsel %vm350, %v1001, 0
        %v1011 = vsel %vm350, %v1002, 0
        %v1014 = vsel %vm350, %v1003, 0
        %1016 = vmatpush.msra.mxu0 0.0
        %1017 = vmatpush.msra.mxu0 0.0
        %1018 = vmatpush.msra.mxu0 0.0
        %1019 = vmatpush.msra.mxu0 0.0
        %1020 = vmatpush.msra.mxu0 0.0
        %1021 = vmatpush.msra.mxu0 0.0
        %1022 = vmatpush.msra.mxu0 0.0
        %1023 = vmatpush.msra.mxu0 0.0
        %1024 = vmatpush.msra.mxu0 0.0
        %1025 = vmatpush.msra.mxu0 0.0
        %1026 = vmatpush.msra.mxu0 0.0
        %1027 = vmatpush.msra.mxu0 0.0
        %1028 = vmatpush.msra.mxu0 0.0
        %1029 = vmatpush.msra.mxu0 0.0
        %1030 = vmatpush.msra.mxu0 %v494
        %1031 = vmatpush.msra.mxu0 %v491
        %1032 = vmatmul.f32.gmra.mxu0 %v1005
        %v1033 = vpop.f32.mrf.mxu0
        %v1034 = vadd.f32 0.0, %v1033
        %1035 = vmatmul.f32.gmra.mxu0 %v1008
        %v1036 = vpop.f32.mrf.mxu0
        %v1037 = vadd.f32 0.0, %v1036
        %1038 = vmatmul.f32.gmra.mxu0 %v1011
        %v1039 = vpop.f32.mrf.mxu0
        %v1040 = vadd.f32 0.0, %v1039
        %1041 = vmatmul.f32.gmra.mxu0 %v1014
        %v1042 = vpop.f32.mrf.mxu0
        %v1043 = vadd.f32 0.0, %v1042
        %1044 = vdwg.mxu0
        %s1045 = sld [smem:[#allocation2]]
        %s1046 = sld [smem:[#allocation2 + $0x1]]
        %v1047 = vsub.f32 %v989, %v944
        %v1048 = vsub.f32 %v992, %v947
        %v1049 = vsub.f32 %v995, %v950
        %v1050 = vsub.f32 %v998, %v953
        %v1051 = vstv %s1045
        %v1052 = vmul.f32 %v1051, %v1047
        %v1053 = vmul.f32 %v1051, %v1048
        %v1054 = vmul.f32 %v1051, %v1049
        %v1055 = vmul.f32 %v1051, %v1050
        %v1056 = vstv %s1046
        %v1057 = vadd.f32 %v1052, %v1056
        %v1058 = vadd.f32 %v1053, %v1056
        %v1059 = vadd.f32 %v1054, %v1056
        %v1060 = vadd.f32 %v1055, %v1056
        %v1061 = vmax.f32 %v1057, -3.0
        %v1062 = vmax.f32 %v1058, -3.0
        %v1063 = vmax.f32 %v1059, -3.0
        %v1064 = vmax.f32 %v1060, -3.0
        %v1065 = vmin.f32 %v1061, 3.0
        %v1066 = vmin.f32 %v1062, 3.0
        %v1067 = vmin.f32 %v1063, 3.0
        %v1068 = vmin.f32 %v1064, 3.0
        %v1069 = vtanh.pop %v1065
        %v1070 = vtanh.pop %v1066
        %v1071 = vtanh.pop %v1067
        %v1072 = vtanh.pop %v1068
        %v1073 = vadd.f32 %v944, %v1069
        %v1074 = vadd.f32 %v947, %v1070
        %v1075 = vadd.f32 %v950, %v1071
        %v1076 = vadd.f32 %v953, %v1072
        %s1077 = sld [smem:[#allocation2 + $0x2]]
        %s1078 = sld [smem:[#allocation2 + $0x3]]
        %v1079 = vsub.f32 %v1034, %v989
        %v1080 = vsub.f32 %v1037, %v992
        %v1081 = vsub.f32 %v1040, %v995
        %v1082 = vsub.f32 %v1043, %v998
        %v1083 = vstv %s1077
        %v1084 = vmul.f32 %v1083, %v1079
        %v1085 = vmul.f32 %v1083, %v1080
        %v1086 = vmul.f32 %v1083, %v1081
        %v1087 = vmul.f32 %v1083, %v1082
        %v1088 = vstv %s1078
        %v1089 = vadd.f32 %v1084, %v1088
        %v1090 = vadd.f32 %v1085, %v1088
        %v1091 = vadd.f32 %v1086, %v1088
        %v1092 = vadd.f32 %v1087, %v1088
        %v1093 = vmax.f32 %v1089, -3.0
        %v1094 = vmax.f32 %v1090, -3.0
        %v1095 = vmax.f32 %v1091, -3.0
        %v1096 = vmax.f32 %v1092, -3.0
        %v1097 = vmin.f32 %v1093, 3.0
        %v1098 = vmin.f32 %v1094, 3.0
        %v1099 = vmin.f32 %v1095, 3.0
        %v1100 = vmin.f32 %v1096, 3.0
        %v1101 = vtanh.pop %v1097
        %v1102 = vtanh.pop %v1098
        %v1103 = vtanh.pop %v1099
        %v1104 = vtanh.pop %v1100
        %v1105 = vadd.f32 %v1073, %v1101
        %v1106 = vadd.f32 %v1074, %v1102
        %v1107 = vadd.f32 %v1075, %v1103
        %v1108 = vadd.f32 %v1076, %v1104
        %s1109 = scalar_lea.vmem %s339, 64 [#allocation7]
        %1110 = vst.msk [vmem:[%s1109] sm:$0xff] %vm701, %v1105
        %1111 = vst.msk [vmem:[%s1109 + $0x8] sm:$0xff] %vm701, %v1106
        %1112 = vst.msk [vmem:[%s1109 + $0x10] sm:$0xff] %vm701, %v1107
        %1113 = vst.msk [vmem:[%s1109 + $0x18] sm:$0xff] %vm701, %v1108
        %v1114 = vld [vmem:[%s2] sm:$0xff]
        %v1115 = vld [vmem:[%s2 + $0x8] sm:$0xff]
        %v1116 = vld [vmem:[%s2 + $0x10] sm:$0xff]
        %v1117 = vld [vmem:[%s2 + $0x18] sm:$0xff]
        %v1119 = vsel %vm350, %v1114, 0
        %v1122 = vsel %vm350, %v1115, 0
        %v1125 = vsel %vm350, %v1116, 0
        %v1128 = vsel %vm350, %v1117, 0
        %1130 = vmatpush.msra.mxu0 0.0
        %1131 = vmatpush.msra.mxu0 0.0
        %1132 = vmatpush.msra.mxu0 0.0
        %1133 = vmatpush.msra.mxu0 0.0
        %1134 = vmatpush.msra.mxu0 0.0
        %1135 = vmatpush.msra.mxu0 0.0
        %1136 = vmatpush.msra.mxu0 0.0
        %1137 = vmatpush.msra.mxu0 0.0
        %1138 = vmatpush.msra.mxu0 0.0
        %1139 = vmatpush.msra.mxu0 0.0
        %1140 = vmatpush.msra.mxu0 0.0
        %1141 = vmatpush.msra.mxu0 0.0
        %1142 = vmatpush.msra.mxu0 0.0
        %1143 = vmatpush.msra.mxu0 0.0
        %1144 = vmatpush.msra.mxu0 %v414
        %1145 = vmatpush.msra.mxu0 %v411
        %1146 = vmatmul.f32.gmra.mxu0 %v1119
        %v1147 = vpop.f32.mrf.mxu0
        %v1148 = vadd.f32 0.0, %v1147
        %1149 = vmatmul.f32.gmra.mxu0 %v1122
        %v1150 = vpop.f32.mrf.mxu0
        %v1151 = vadd.f32 0.0, %v1150
        %1152 = vmatmul.f32.gmra.mxu0 %v1125
        %v1153 = vpop.f32.mrf.mxu0
        %v1154 = vadd.f32 0.0, %v1153
        %1155 = vmatmul.f32.gmra.mxu0 %v1128
        %v1156 = vpop.f32.mrf.mxu0
        %v1157 = vadd.f32 0.0, %v1156
        %1158 = vdwg.mxu0
        %v1159 = vld [vmem:[%s4] sm:$0xff]
        %v1160 = vld [vmem:[%s4 + $0x8] sm:$0xff]
        %v1161 = vld [vmem:[%s4 + $0x10] sm:$0xff]
        %v1162 = vld [vmem:[%s4 + $0x18] sm:$0xff]
        %v1164 = vsel %vm350, %v1159, 0
        %v1167 = vsel %vm350, %v1160, 0
        %v1170 = vsel %vm350, %v1161, 0
        %v1173 = vsel %vm350, %v1162, 0
        %1175 = vmatpush.msra.mxu0 0.0
        %1176 = vmatpush.msra.mxu0 0.0
        %1177 = vmatpush.msra.mxu0 0.0
        %1178 = vmatpush.msra.mxu0 0.0
        %1179 = vmatpush.msra.mxu0 0.0
        %1180 = vmatpush.msra.mxu0 0.0
        %1181 = vmatpush.msra.mxu0 0.0
        %1182 = vmatpush.msra.mxu0 0.0
        %1183 = vmatpush.msra.mxu0 0.0
        %1184 = vmatpush.msra.mxu0 0.0
        %1185 = vmatpush.msra.mxu0 0.0
        %1186 = vmatpush.msra.mxu0 0.0
        %1187 = vmatpush.msra.mxu0 0.0
        %1188 = vmatpush.msra.mxu0 0.0
        %1189 = vmatpush.msra.mxu0 %v457
        %1190 = vmatpush.msra.mxu0 %v454
        %1191 = vmatmul.f32.gmra.mxu0 %v1164
        %v1192 = vpop.f32.mrf.mxu0
        %v1193 = vadd.f32 0.0, %v1192
        %1194 = vmatmul.f32.gmra.mxu0 %v1167
        %v1195 = vpop.f32.mrf.mxu0
        %v1196 = vadd.f32 0.0, %v1195
        %1197 = vmatmul.f32.gmra.mxu0 %v1170
        %v1198 = vpop.f32.mrf.mxu0
        %v1199 = vadd.f32 0.0, %v1198
        %1200 = vmatmul.f32.gmra.mxu0 %v1173
        %v1201 = vpop.f32.mrf.mxu0
        %v1202 = vadd.f32 0.0, %v1201
        %1203 = vdwg.mxu0
        %v1204 = vld [vmem:[%s6] sm:$0xff]
        %v1205 = vld [vmem:[%s6 + $0x8] sm:$0xff]
        %v1206 = vld [vmem:[%s6 + $0x10] sm:$0xff]
        %v1207 = vld [vmem:[%s6 + $0x18] sm:$0xff]
        %v1209 = vsel %vm350, %v1204, 0
        %v1212 = vsel %vm350, %v1205, 0
        %v1215 = vsel %vm350, %v1206, 0
        %v1218 = vsel %vm350, %v1207, 0
        %1220 = vmatpush.msra.mxu0 0.0
        %1221 = vmatpush.msra.mxu0 0.0
        %1222 = vmatpush.msra.mxu0 0.0
        %1223 = vmatpush.msra.mxu0 0.0
        %1224 = vmatpush.msra.mxu0 0.0
        %1225 = vmatpush.msra.mxu0 0.0
        %1226 = vmatpush.msra.mxu0 0.0
        %1227 = vmatpush.msra.mxu0 0.0
        %1228 = vmatpush.msra.mxu0 0.0
        %1229 = vmatpush.msra.mxu0 0.0
        %1230 = vmatpush.msra.mxu0 0.0
        %1231 = vmatpush.msra.mxu0 0.0
        %1232 = vmatpush.msra.mxu0 0.0
        %1233 = vmatpush.msra.mxu0 0.0
        %1234 = vmatpush.msra.mxu0 %v500
        %1235 = vmatpush.msra.mxu0 %v497
        %1236 = vmatmul.f32.gmra.mxu0 %v1209
        %v1237 = vpop.f32.mrf.mxu0
        %v1238 = vadd.f32 0.0, %v1237
        %1239 = vmatmul.f32.gmra.mxu0 %v1212
        %v1240 = vpop.f32.mrf.mxu0
        %v1241 = vadd.f32 0.0, %v1240
        %1242 = vmatmul.f32.gmra.mxu0 %v1215
        %v1243 = vpop.f32.mrf.mxu0
        %v1244 = vadd.f32 0.0, %v1243
        %1245 = vmatmul.f32.gmra.mxu0 %v1218
        %v1246 = vpop.f32.mrf.mxu0
        %v1247 = vadd.f32 0.0, %v1246
        %1248 = vdwg.mxu0
        %s1249 = sld [smem:[#allocation2]]
        %s1250 = sld [smem:[#allocation2 + $0x1]]
        %v1251 = vsub.f32 %v1193, %v1148
        %v1252 = vsub.f32 %v1196, %v1151
        %v1253 = vsub.f32 %v1199, %v1154
        %v1254 = vsub.f32 %v1202, %v1157
        %v1255 = vstv %s1249
        %v1256 = vmul.f32 %v1255, %v1251
        %v1257 = vmul.f32 %v1255, %v1252
        %v1258 = vmul.f32 %v1255, %v1253
        %v1259 = vmul.f32 %v1255, %v1254
        %v1260 = vstv %s1250
        %v1261 = vadd.f32 %v1256, %v1260
        %v1262 = vadd.f32 %v1257, %v1260
        %v1263 = vadd.f32 %v1258, %v1260
        %v1264 = vadd.f32 %v1259, %v1260
        %v1265 = vmax.f32 %v1261, -3.0
        %v1266 = vmax.f32 %v1262, -3.0
        %v1267 = vmax.f32 %v1263, -3.0
        %v1268 = vmax.f32 %v1264, -3.0
        %v1269 = vmin.f32 %v1265, 3.0
        %v1270 = vmin.f32 %v1266, 3.0
        %v1271 = vmin.f32 %v1267, 3.0
        %v1272 = vmin.f32 %v1268, 3.0
        %v1273 = vtanh.pop %v1269
        %v1274 = vtanh.pop %v1270
        %v1275 = vtanh.pop %v1271
        %v1276 = vtanh.pop %v1272
        %v1277 = vadd.f32 %v1148, %v1273
        %v1278 = vadd.f32 %v1151, %v1274
        %v1279 = vadd.f32 %v1154, %v1275
        %v1280 = vadd.f32 %v1157, %v1276
        %s1281 = sld [smem:[#allocation2 + $0x2]]
        %s1282 = sld [smem:[#allocation2 + $0x3]]
        %v1283 = vsub.f32 %v1238, %v1193
        %v1284 = vsub.f32 %v1241, %v1196
        %v1285 = vsub.f32 %v1244, %v1199
        %v1286 = vsub.f32 %v1247, %v1202
        %v1287 = vstv %s1281
        %v1288 = vmul.f32 %v1287, %v1283
        %v1289 = vmul.f32 %v1287, %v1284
        %v1290 = vmul.f32 %v1287, %v1285
        %v1291 = vmul.f32 %v1287, %v1286
        %v1292 = vstv %s1282
        %v1293 = vadd.f32 %v1288, %v1292
        %v1294 = vadd.f32 %v1289, %v1292
        %v1295 = vadd.f32 %v1290, %v1292
        %v1296 = vadd.f32 %v1291, %v1292
        %v1297 = vmax.f32 %v1293, -3.0
        %v1298 = vmax.f32 %v1294, -3.0
        %v1299 = vmax.f32 %v1295, -3.0
        %v1300 = vmax.f32 %v1296, -3.0
        %v1301 = vmin.f32 %v1297, 3.0
        %v1302 = vmin.f32 %v1298, 3.0
        %v1303 = vmin.f32 %v1299, 3.0
        %v1304 = vmin.f32 %v1300, 3.0
        %v1305 = vtanh.pop %v1301
        %v1306 = vtanh.pop %v1302
        %v1307 = vtanh.pop %v1303
        %v1308 = vtanh.pop %v1304
        %v1309 = vadd.f32 %v1277, %v1305
        %v1310 = vadd.f32 %v1278, %v1306
        %v1311 = vadd.f32 %v1279, %v1307
        %v1312 = vadd.f32 %v1280, %v1308
        %s1313 = scalar_lea.vmem %s339, 96 [#allocation7]
        %1314 = vst.msk [vmem:[%s1313] sm:$0xff] %vm701, %v1309
        %1315 = vst.msk [vmem:[%s1313 + $0x8] sm:$0xff] %vm701, %v1310
        %1316 = vst.msk [vmem:[%s1313 + $0x10] sm:$0xff] %vm701, %v1311
        %1317 = vst.msk [vmem:[%s1313 + $0x18] sm:$0xff] %vm701, %v1312
        %s1318 = sand.u32 %s207, 1
        %s1319 = scalar_lea.sflag [#allocation4], %s1318
        %s1320 = sand.u32 %s207, 1
        %s1321 = smul.addr %s1320, 128
        %s1322 = scalar_lea.vmem [#allocation7], %s1321
        // Predicated region
        $region61: #{tpu_custom_call.1} parent=51 // pred_check
          %p1323 = pneg %p217
        $region62: #{tpu_custom_call.1} parent=51 // pred_check_branch
          %1325 = sbr.rel (%p1323) target = $region64
        $region63: #{tpu_custom_call.1} parent=51 // pred_region
          %1327 = vsyncadd %s1319, 0
          %s1328 = smul.addr %s26, 16
          %s1329 = smul.addr %s1328, 8
          %s1330 = scalar_lea.hbm %s8, %s1329
          %s1331 = sshll.u32 %s1322, 4
          %s1332 = int_to_ptr.vmem [resolvable:$true] %s1331
          %s1333 = sshll.u32 %s1330, 4
          %s1334 = int_to_ptr.hbm [resolvable:$true] %s1333
          %1339 = dma.vmem_to_hbm [thread:$0]  %s1332, 2048, %s1334, %s1319, 128, 128, 8
        $region64: #{tpu_custom_call.1} parent=51 // pred_fallthru
          _
      $region52: #{tpu_custom_call.1} parent=5 // pred_fallthru
        _
      %p1340 = scmp.le.s32.totalorder 2, %s21
      // Predicated region
      $region65: #{tpu_custom_call.1} parent=5 // pred_check
        %p1341 = pneg %p1340
      $region66: #{tpu_custom_call.1} parent=5 // pred_check_branch
        %1343 = sbr.rel (%p1341) target = $region68
      $region67: #{tpu_custom_call.1} parent=5 // pred_region
        %s1344 = ssub.s32 %s21, 2
        // Predicated region
        $region69: #{tpu_custom_call.1} parent=67 // pred_check
          %p1345 = pneg %p223
        $region70: #{tpu_custom_call.1} parent=67 // pred_check_branch
          %1347 = sbr.rel (%p1345) target = $region72
        $region71: #{tpu_custom_call.1} parent=67 // pred_region
          %s1348 = sand.u32 %s208, 1
          %s1349 = scalar_lea.sflag [#allocation4], %s1348
          %s1350 = sand.u32 %s208, 1
          %s1351 = smul.addr %s1350, 128
          %s1352 = scalar_lea.vmem [#allocation7], %s1351
          %1354 = dma.done %s1349, 2048
        $region72: #{tpu_custom_call.1} parent=67 // pred_fallthru
          _
      $region68: #{tpu_custom_call.1} parent=5 // pred_fallthru
        _
    $region6: #{tpu_custom_call.1} parent=1 // loop_footer
      %s25 = sadd.s32 1, %s21
    $region7: #{tpu_custom_call.1} parent=1 // loop_footer_branch
      %20 = sbr.rel target = $region3
    $region8: #{tpu_custom_call.1} parent=1 // loop_exit
      _
    %1355 = vsyncpa [#allocation3], 1
    %s1356 = scalar_lea.sflag [#allocation3], 1
    %1357 = vsyncpa %s1356, 1
    %1358 = vsyncpa [#allocation4], 1
    %s1359 = scalar_lea.sflag [#allocation4], 1
    %1360 = vsyncpa %s1359, 1
    %1361 = vsyncpa [#allocation5], 1
    %s1362 = scalar_lea.sflag [#allocation5], 1
    %1363 = vsyncpa %s1362, 1

</llo_original>
